<compile_context>
chip_gen: v7x
topology: tpu7x:2x2x1
jax: 0.10.0
libtpu: 0.0.40
codegen_flags: <defaults>
</compile_context>

<pallas_src>
import jax
import jax.numpy as jnp
from jax.experimental import pallas as pl
from jax.experimental.pallas import tpu as pltpu

INPUT_SIZE = 66
E_NODE = 50
A_NODE = 20
L_NODE = 50
OUTPUT_SIZE = 2

LANE = 128                      # vreg lane width; each attention column owns a 128-lane slab
GROUP = 2                       # attention columns per score matmul (256-lane N tile)
GW = GROUP * LANE               # 256 lanes per group
NGROUP = A_NODE // GROUP        # 10 interleaved matmul+exp groups
EXP_CLAMP = 80.0                # exp(80) ~ 5.5e34 and 20*exp(80) < f32 max -> no inf/NaN

# Packed attention-column order: the kept column (index 1) first, so its score slab
# is the first 128 lanes of the first group.
COL_ORDER = (1, 0) + tuple(range(2, A_NODE))


def afs_kernel(x_ref, ew_ref, eb_ref, aw_ref, ab_ref,
               lw1_ref, lb1_ref, lw2_ref, lb2_ref, o_ref):
    """One batch block: (TB, F) -> (TB, OUTPUT_SIZE)."""
    x_f32 = x_ref[...].astype(jnp.float32)                     # (TB, F) f32 features
    x_mm = x_f32.astype(ew_ref.dtype)                          # bf16 MXU operand (VPU cast)

    # ---- Attention encoder: E = tanh(x @ E_W + E_b)  (f32 accumulate / f32 tanh) ----
    e = jnp.tanh(jnp.dot(x_mm, ew_ref[...], preferred_element_type=jnp.float32)
                 + eb_ref[...])                                 # (TB, E_node) f32
    e_mm = e.astype(aw_ref.dtype)

    # ---- Interleaved score matmul + softmax denominator ------------------------------
    # Group 0 holds [kept column (orig 1), orig column 0]; s1 is the shift so the kept
    # column's exp is exactly 1 (folded into acc0's initial 1.0).
    s_g = (jnp.dot(e_mm, aw_ref[:, 0:GW], preferred_element_type=jnp.float32)
           + ab_ref[:, 0:GW])                                   # (TB, 256) f32
    s1 = s_g[:, :LANE]                                          # (TB, 128) kept-column scores
    acc0 = 1.0 + jnp.exp(jnp.minimum(s_g[:, LANE:GW] - s1, EXP_CLAMP))
    acc1 = jnp.zeros_like(s1)

    for g in range(1, NGROUP):                                  # static unroll: 9 groups
        lo = g * GW
        sg = (jnp.dot(e_mm, aw_ref[:, lo:lo + GW],
                      preferred_element_type=jnp.float32)
              + ab_ref[:, lo:lo + GW])                          # (TB, 256) f32
        contrib = (jnp.exp(jnp.minimum(sg[:, :LANE] - s1, EXP_CLAMP))
                   + jnp.exp(jnp.minimum(sg[:, LANE:GW] - s1, EXP_CLAMP)))
        if g % 2:                                               # two partial accumulators (ILP)
            acc1 = acc1 + contrib
        else:
            acc0 = acc0 + contrib

    attn = pl.reciprocal(acc0 + acc1, approx=True)[:, :INPUT_SIZE]   # (TB, F) f32
    gfeat = (x_f32 * attn).astype(lw1_ref.dtype)                # gated features, bf16 operand

    # ---- Learning module --------------------------------------------------------------
    h = jnp.maximum(
        jnp.dot(gfeat, lw1_ref[...], preferred_element_type=jnp.float32) + lb1_ref[...],
        0.0)                                                    # (TB, L_node) f32
    o = (jnp.dot(h.astype(lw2_ref.dtype), lw2_ref[...],
                 preferred_element_type=jnp.float32)
         + lb2_ref[...])                                        # (TB, OUTPUT_SIZE) f32
    o_ref[...] = o.astype(o_ref.dtype)


def pack_params(params, use_bf16=True):
    """One-time parameter preprocessing — call once, reuse for every forward.

    bf16 matmul operands are valid (and fastest) on v5e, v6e and v7x; accumulation
    and all elementwise math inside the kernel stay f32.
    """
    E_W, E_b, A_W, A_b, L_W1, L_b1, L_W2, L_b2 = params
    mm_dtype = jnp.bfloat16 if use_bf16 else jnp.float32
    order = jnp.array(COL_ORDER, dtype=jnp.int32)

    # A_W: (F, E, A) -> (E, A, F), reorder columns (kept column first), zero-pad F to
    # 128 lanes, flatten to (E, A*128).
    aw = jnp.transpose(A_W, (1, 2, 0))                         # (E, A, F)
    aw = jnp.take(aw, order, axis=1)
    aw = jnp.pad(aw, ((0, 0), (0, 0), (0, LANE - INPUT_SIZE)))
    aw = aw.reshape(E_NODE, A_NODE * LANE)

    # A_b: (F, A) -> (A, F), same reorder + pad, flatten to (1, A*128).
    ab = jnp.take(jnp.transpose(A_b, (1, 0)), order, axis=0)   # (A, F)
    ab = jnp.pad(ab, ((0, 0), (0, LANE - INPUT_SIZE))).reshape(1, A_NODE * LANE)

    return (E_W.astype(mm_dtype),
            E_b[None, :].astype(jnp.float32),
            aw.astype(mm_dtype),
            ab.astype(jnp.float32),
            L_W1.astype(mm_dtype),
            L_b1[None, :].astype(jnp.float32),
            L_W2.astype(mm_dtype),
            L_b2[None, :].astype(jnp.float32))


def _pick_batch_block(batch, target):
    """Per-step batch block.

    Tiny batches run as a single full block (no partial-block padding).  Larger
    batches use a multiple of 32 (safe (8,128) tiling for f32 and bf16), capped at
    `target` and at ~batch/2 so the "parallel" batch axis has >= 2 grid steps and
    both v7x TensorCores get work.
    """
    if batch <= 64:
        return batch
    half = -(-batch // 2)                      # ceil(batch / 2)
    return min(target, max(32, (half // 32) * 32))


def afs_forward(x, packed_params, *, batch_block=1024):
    """Fused AFS forward.

    With the interleaved per-group score loop the live intermediates are only a few
    (bb, 256) f32 slabs, so batch_block=1024 (the default) fits comfortably inside the
    explicit 32 MiB VMEM limit on every generation (v5e / v6e / v7x).
    """
    ew, eb, aw, ab, lw1, lb1, lw2, lb2 = packed_params
    B = x.shape[0]

    bb = _pick_batch_block(B, batch_block)
    grid = (pl.cdiv(B, bb),)

    def resident(arr):                         # full-array VMEM block, constant index map
        return pl.BlockSpec(arr.shape, lambda i: (0, 0))

    return pl.pallas_call(
        afs_kernel,
        out_shape=jax.ShapeDtypeStruct((B, OUTPUT_SIZE), jnp.float32),
        grid=grid,
        in_specs=[pl.BlockSpec((bb, INPUT_SIZE), lambda i: (i, 0)),
                  resident(ew), resident(eb), resident(aw), resident(ab),
                  resident(lw1), resident(lb1), resident(lw2), resident(lb2)],
        out_specs=pl.BlockSpec((bb, OUTPUT_SIZE), lambda i: (i, 0)),
        compiler_params=pltpu.CompilerParams(
            dimension_semantics=("parallel",),        # megacore / dual-TC sharding on v7x
            vmem_limit_bytes=32 * 1024 * 1024,        # explicit: covers v5e's 16 MiB default
        ),
    )(x, ew, eb, aw, ab, lw1, lb1, lw2, lb2)


def afs_reference(x, params, matmul_dtype=jnp.float32):
    """Pure-JAX reference mirroring the PyTorch forward; matmul_dtype lets us mirror the
    kernel's mixed-precision (bf16 operand / f32 accumulate) path."""
    E_W, E_b, A_W, A_b, L_W1, L_b1, L_W2, L_b2 = params
    c = lambda a: a.astype(matmul_dtype)
    E = jnp.tanh(jnp.dot(c(x), c(E_W), preferred_element_type=jnp.float32) + E_b)
    scores = jnp.einsum('be,fea->bfa', c(E), c(A_W),
                        preferred_element_type=jnp.float32) + A_b[None, :, :]
    attn = jax.nn.softmax(scores, axis=-1)[..., 1]
    g = x * attn
    h = jax.nn.relu(jnp.dot(c(g), c(L_W1), preferred_element_type=jnp.float32) + L_b1)
    return jnp.dot(c(h), c(L_W2), preferred_element_type=jnp.float32) + L_b2


def init_params(key):
    ks = jax.random.split(key, 8)
    return (jax.random.normal(ks[0], (INPUT_SIZE, E_NODE), jnp.float32),
            jax.random.normal(ks[1], (E_NODE,), jnp.float32),
            jax.random.normal(ks[2], (INPUT_SIZE, E_NODE, A_NODE), jnp.float32),
            jax.random.normal(ks[3], (INPUT_SIZE, A_NODE), jnp.float32),
            jax.random.normal(ks[4], (INPUT_SIZE, L_NODE), jnp.float32),
            jax.random.normal(ks[5], (L_NODE,), jnp.float32),
            jax.random.normal(ks[6], (L_NODE, OUTPUT_SIZE), jnp.float32),
            jax.random.normal(ks[7], (OUTPUT_SIZE,), jnp.float32))


if __name__ == "__main__":
    key = jax.random.PRNGKey(0)
    pkey, xkey = jax.random.split(key)
    params = init_params(pkey)

    B = 8
    x = jax.random.normal(xkey, (B, INPUT_SIZE), jnp.float32)

    # --- f32 matmul-operand path: structural check against the pure-JAX reference ----
    packed_f32 = pack_params(params, use_bf16=False)
    out_f32 = jax.block_until_ready(afs_forward(x, packed_f32))
    ref_f32 = afs_reference(x, params)
    assert out_f32.shape == (B, OUTPUT_SIZE)
    err_f32 = float(jnp.max(jnp.abs(out_f32 - ref_f32)))
    assert jnp.allclose(out_f32, ref_f32, rtol=2e-2, atol=1e-1), (
        f"f32 max abs err {err_f32}")

    # --- bf16 matmul-operand path (default on v5e/v6e/v7x), checked against a matching
    #     mixed-precision JAX reference ------------------------------------------------
    packed_bf16 = pack_params(params, use_bf16=True)
    out_bf16 = jax.block_until_ready(afs_forward(x, packed_bf16))
    ref_bf16 = afs_reference(x, params, matmul_dtype=jnp.bfloat16)
    err_bf16 = float(jnp.max(jnp.abs(out_bf16 - ref_bf16)))
    assert jnp.allclose(out_bf16, ref_bf16, rtol=1e-1, atol=1.0), (
        f"bf16 max abs err {err_bf16}")

    print("KERNEL_OK")
</pallas_src>

<mosaic_0001>
module attributes {stable_mosaic.version = 11 : i64} {
  func.func @afs_kernel(%arg0: i32, %arg1: memref<8x66xf32, #tpu.memory_space<vmem>>, %arg2: memref<66x50xf32, #tpu.memory_space<vmem>>, %arg3: memref<1x50xf32, #tpu.memory_space<vmem>>, %arg4: memref<50x2560xf32, #tpu.memory_space<vmem>>, %arg5: memref<1x2560xf32, #tpu.memory_space<vmem>>, %arg6: memref<66x50xf32, #tpu.memory_space<vmem>>, %arg7: memref<1x50xf32, #tpu.memory_space<vmem>>, %arg8: memref<50x2xf32, #tpu.memory_space<vmem>>, %arg9: memref<1x2xf32, #tpu.memory_space<vmem>>, %arg10: memref<8x2xf32, #tpu.memory_space<vmem>>) attributes {dimension_semantics = [#tpu.dimension_semantics<parallel>], iteration_bounds = array<i64: 1>, scalar_prefetch = 0 : i64, scratch_operands = 0 : i64, tpu.core_type = #tpu.core_type<tc>, window_params = [{transform_indices = @transform_0, window_bounds = array<i64: 8, 66>}, {pipeline_mode = #tpu.pipeline_mode<synchronous>, transform_indices = @transform_1, window_bounds = array<i64: 66, 50>}, {pipeline_mode = #tpu.pipeline_mode<synchronous>, transform_indices = @transform_2, window_bounds = array<i64: 1, 50>}, {pipeline_mode = #tpu.pipeline_mode<synchronous>, transform_indices = @transform_3, window_bounds = array<i64: 50, 2560>}, {pipeline_mode = #tpu.pipeline_mode<synchronous>, transform_indices = @transform_4, window_bounds = array<i64: 1, 2560>}, {pipeline_mode = #tpu.pipeline_mode<synchronous>, transform_indices = @transform_5, window_bounds = array<i64: 66, 50>}, {pipeline_mode = #tpu.pipeline_mode<synchronous>, transform_indices = @transform_6, window_bounds = array<i64: 1, 50>}, {pipeline_mode = #tpu.pipeline_mode<synchronous>, transform_indices = @transform_7, window_bounds = array<i64: 50, 2>}, {pipeline_mode = #tpu.pipeline_mode<synchronous>, transform_indices = @transform_8, window_bounds = array<i64: 1, 2>}, {transform_indices = @transform_9, window_bounds = array<i64: 8, 2>}]} {
    %c0 = arith.constant 0 : index
    %c0_0 = arith.constant 0 : index
    %0 = vector.load %arg1[%c0, %c0_0] : memref<8x66xf32, #tpu.memory_space<vmem>>, vector<8x66xf32>
    %c0_1 = arith.constant 0 : index
    %c0_2 = arith.constant 0 : index
    %1 = vector.load %arg2[%c0_1, %c0_2] : memref<66x50xf32, #tpu.memory_space<vmem>>, vector<66x50xf32>
    %cst = arith.constant dense<0.000000e+00> : vector<8x50xf32>
    %2 = tpu.matmul %0, %1, %cst {dimension_numbers = #tpu.dot_dimension_numbers<[1], [0], [0], [1], [0, 0, 1, 1], [], []>} : vector<8x66xf32>, vector<66x50xf32>, vector<8x50xf32> -> vector<8x50xf32>
    %c0_3 = arith.constant 0 : index
    %c0_4 = arith.constant 0 : index
    %3 = vector.load %arg3[%c0_3, %c0_4] : memref<1x50xf32, #tpu.memory_space<vmem>>, vector<1x50xf32>
    %4 = vector.broadcast %3 : vector<1x50xf32> to vector<8x50xf32>
    %5 = arith.addf %2, %4 : vector<8x50xf32>
    %6 = math.tanh %5 : vector<8x50xf32>
    %c0_5 = arith.constant 0 : index
    %c0_6 = arith.constant 0 : index
    %7 = vector.load %arg4[%c0_5, %c0_6] : memref<50x2560xf32, #tpu.memory_space<vmem>>, vector<50x256xf32>
    %cst_7 = arith.constant dense<0.000000e+00> : vector<8x256xf32>
    %8 = tpu.matmul %6, %7, %cst_7 {dimension_numbers = #tpu.dot_dimension_numbers<[1], [0], [0], [1], [0, 0, 1, 1], [], []>} : vector<8x50xf32>, vector<50x256xf32>, vector<8x256xf32> -> vector<8x256xf32>
    %c0_8 = arith.constant 0 : index
    %c0_9 = arith.constant 0 : index
    %9 = vector.load %arg5[%c0_8, %c0_9] : memref<1x2560xf32, #tpu.memory_space<vmem>>, vector<1x256xf32>
    %10 = vector.broadcast %9 : vector<1x256xf32> to vector<8x256xf32>
    %11 = arith.addf %8, %10 : vector<8x256xf32>
    %12 = vector.extract_strided_slice %11 {offsets = [0, 0], sizes = [8, 128], strides = [1, 1]} : vector<8x256xf32> to vector<8x128xf32>
    %13 = vector.extract_strided_slice %11 {offsets = [0, 128], sizes = [8, 128], strides = [1, 1]} : vector<8x256xf32> to vector<8x128xf32>
    %14 = arith.subf %13, %12 : vector<8x128xf32>
    %cst_10 = arith.constant 8.000000e+01 : f32
    %15 = vector.broadcast %cst_10 : f32 to vector<8x128xf32>
    %16 = arith.minimumf %14, %15 : vector<8x128xf32>
    %17 = math.exp %16 : vector<8x128xf32>
    %cst_11 = arith.constant 1.000000e+00 : f32
    %18 = vector.broadcast %cst_11 : f32 to vector<8x128xf32>
    %19 = arith.addf %18, %17 : vector<8x128xf32>
    %cst_12 = arith.constant 0.000000e+00 : f32
    %20 = vector.broadcast %cst_12 : f32 to vector<8x128xf32>
    %c0_13 = arith.constant 0 : index
    %c256 = arith.constant 256 : index
    %21 = vector.load %arg4[%c0_13, %c256] : memref<50x2560xf32, #tpu.memory_space<vmem>>, vector<50x256xf32>
    %cst_14 = arith.constant dense<0.000000e+00> : vector<8x256xf32>
    %22 = tpu.matmul %6, %21, %cst_14 {dimension_numbers = #tpu.dot_dimension_numbers<[1], [0], [0], [1], [0, 0, 1, 1], [], []>} : vector<8x50xf32>, vector<50x256xf32>, vector<8x256xf32> -> vector<8x256xf32>
    %c0_15 = arith.constant 0 : index
    %c256_16 = arith.constant 256 : index
    %23 = vector.load %arg5[%c0_15, %c256_16] : memref<1x2560xf32, #tpu.memory_space<vmem>>, vector<1x256xf32>
    %24 = vector.broadcast %23 : vector<1x256xf32> to vector<8x256xf32>
    %25 = arith.addf %22, %24 : vector<8x256xf32>
    %26 = vector.extract_strided_slice %25 {offsets = [0, 0], sizes = [8, 128], strides = [1, 1]} : vector<8x256xf32> to vector<8x128xf32>
    %27 = arith.subf %26, %12 : vector<8x128xf32>
    %cst_17 = arith.constant 8.000000e+01 : f32
    %28 = vector.broadcast %cst_17 : f32 to vector<8x128xf32>
    %29 = arith.minimumf %27, %28 : vector<8x128xf32>
    %30 = math.exp %29 : vector<8x128xf32>
    %31 = vector.extract_strided_slice %25 {offsets = [0, 128], sizes = [8, 128], strides = [1, 1]} : vector<8x256xf32> to vector<8x128xf32>
    %32 = arith.subf %31, %12 : vector<8x128xf32>
    %cst_18 = arith.constant 8.000000e+01 : f32
    %33 = vector.broadcast %cst_18 : f32 to vector<8x128xf32>
    %34 = arith.minimumf %32, %33 : vector<8x128xf32>
    %35 = math.exp %34 : vector<8x128xf32>
    %36 = arith.addf %30, %35 : vector<8x128xf32>
    %37 = arith.addf %20, %36 : vector<8x128xf32>
    %c0_19 = arith.constant 0 : index
    %c512 = arith.constant 512 : index
    %38 = vector.load %arg4[%c0_19, %c512] : memref<50x2560xf32, #tpu.memory_space<vmem>>, vector<50x256xf32>
    %cst_20 = arith.constant dense<0.000000e+00> : vector<8x256xf32>
    %39 = tpu.matmul %6, %38, %cst_20 {dimension_numbers = #tpu.dot_dimension_numbers<[1], [0], [0], [1], [0, 0, 1, 1], [], []>} : vector<8x50xf32>, vector<50x256xf32>, vector<8x256xf32> -> vector<8x256xf32>
    %c0_21 = arith.constant 0 : index
    %c512_22 = arith.constant 512 : index
    %40 = vector.load %arg5[%c0_21, %c512_22] : memref<1x2560xf32, #tpu.memory_space<vmem>>, vector<1x256xf32>
    %41 = vector.broadcast %40 : vector<1x256xf32> to vector<8x256xf32>
    %42 = arith.addf %39, %41 : vector<8x256xf32>
    %43 = vector.extract_strided_slice %42 {offsets = [0, 0], sizes = [8, 128], strides = [1, 1]} : vector<8x256xf32> to vector<8x128xf32>
    %44 = arith.subf %43, %12 : vector<8x128xf32>
    %cst_23 = arith.constant 8.000000e+01 : f32
    %45 = vector.broadcast %cst_23 : f32 to vector<8x128xf32>
    %46 = arith.minimumf %44, %45 : vector<8x128xf32>
    %47 = math.exp %46 : vector<8x128xf32>
    %48 = vector.extract_strided_slice %42 {offsets = [0, 128], sizes = [8, 128], strides = [1, 1]} : vector<8x256xf32> to vector<8x128xf32>
    %49 = arith.subf %48, %12 : vector<8x128xf32>
    %cst_24 = arith.constant 8.000000e+01 : f32
    %50 = vector.broadcast %cst_24 : f32 to vector<8x128xf32>
    %51 = arith.minimumf %49, %50 : vector<8x128xf32>
    %52 = math.exp %51 : vector<8x128xf32>
    %53 = arith.addf %47, %52 : vector<8x128xf32>
    %54 = arith.addf %19, %53 : vector<8x128xf32>
    %c0_25 = arith.constant 0 : index
    %c768 = arith.constant 768 : index
    %55 = vector.load %arg4[%c0_25, %c768] : memref<50x2560xf32, #tpu.memory_space<vmem>>, vector<50x256xf32>
    %cst_26 = arith.constant dense<0.000000e+00> : vector<8x256xf32>
    %56 = tpu.matmul %6, %55, %cst_26 {dimension_numbers = #tpu.dot_dimension_numbers<[1], [0], [0], [1], [0, 0, 1, 1], [], []>} : vector<8x50xf32>, vector<50x256xf32>, vector<8x256xf32> -> vector<8x256xf32>
    %c0_27 = arith.constant 0 : index
    %c768_28 = arith.constant 768 : index
    %57 = vector.load %arg5[%c0_27, %c768_28] : memref<1x2560xf32, #tpu.memory_space<vmem>>, vector<1x256xf32>
    %58 = vector.broadcast %57 : vector<1x256xf32> to vector<8x256xf32>
    %59 = arith.addf %56, %58 : vector<8x256xf32>
    %60 = vector.extract_strided_slice %59 {offsets = [0, 0], sizes = [8, 128], strides = [1, 1]} : vector<8x256xf32> to vector<8x128xf32>
    %61 = arith.subf %60, %12 : vector<8x128xf32>
    %cst_29 = arith.constant 8.000000e+01 : f32
    %62 = vector.broadcast %cst_29 : f32 to vector<8x128xf32>
    %63 = arith.minimumf %61, %62 : vector<8x128xf32>
    %64 = math.exp %63 : vector<8x128xf32>
    %65 = vector.extract_strided_slice %59 {offsets = [0, 128], sizes = [8, 128], strides = [1, 1]} : vector<8x256xf32> to vector<8x128xf32>
    %66 = arith.subf %65, %12 : vector<8x128xf32>
    %cst_30 = arith.constant 8.000000e+01 : f32
    %67 = vector.broadcast %cst_30 : f32 to vector<8x128xf32>
    %68 = arith.minimumf %66, %67 : vector<8x128xf32>
    %69 = math.exp %68 : vector<8x128xf32>
    %70 = arith.addf %64, %69 : vector<8x128xf32>
    %71 = arith.addf %37, %70 : vector<8x128xf32>
    %c0_31 = arith.constant 0 : index
    %c1024 = arith.constant 1024 : index
    %72 = vector.load %arg4[%c0_31, %c1024] : memref<50x2560xf32, #tpu.memory_space<vmem>>, vector<50x256xf32>
    %cst_32 = arith.constant dense<0.000000e+00> : vector<8x256xf32>
    %73 = tpu.matmul %6, %72, %cst_32 {dimension_numbers = #tpu.dot_dimension_numbers<[1], [0], [0], [1], [0, 0, 1, 1], [], []>} : vector<8x50xf32>, vector<50x256xf32>, vector<8x256xf32> -> vector<8x256xf32>
    %c0_33 = arith.constant 0 : index
    %c1024_34 = arith.constant 1024 : index
    %74 = vector.load %arg5[%c0_33, %c1024_34] : memref<1x2560xf32, #tpu.memory_space<vmem>>, vector<1x256xf32>
    %75 = vector.broadcast %74 : vector<1x256xf32> to vector<8x256xf32>
    %76 = arith.addf %73, %75 : vector<8x256xf32>
    %77 = vector.extract_strided_slice %76 {offsets = [0, 0], sizes = [8, 128], strides = [1, 1]} : vector<8x256xf32> to vector<8x128xf32>
    %78 = arith.subf %77, %12 : vector<8x128xf32>
    %cst_35 = arith.constant 8.000000e+01 : f32
    %79 = vector.broadcast %cst_35 : f32 to vector<8x128xf32>
    %80 = arith.minimumf %78, %79 : vector<8x128xf32>
    %81 = math.exp %80 : vector<8x128xf32>
    %82 = vector.extract_strided_slice %76 {offsets = [0, 128], sizes = [8, 128], strides = [1, 1]} : vector<8x256xf32> to vector<8x128xf32>
    %83 = arith.subf %82, %12 : vector<8x128xf32>
    %cst_36 = arith.constant 8.000000e+01 : f32
    %84 = vector.broadcast %cst_36 : f32 to vector<8x128xf32>
    %85 = arith.minimumf %83, %84 : vector<8x128xf32>
    %86 = math.exp %85 : vector<8x128xf32>
    %87 = arith.addf %81, %86 : vector<8x128xf32>
    %88 = arith.addf %54, %87 : vector<8x128xf32>
    %c0_37 = arith.constant 0 : index
    %c1280 = arith.constant 1280 : index
    %89 = vector.load %arg4[%c0_37, %c1280] : memref<50x2560xf32, #tpu.memory_space<vmem>>, vector<50x256xf32>
    %cst_38 = arith.constant dense<0.000000e+00> : vector<8x256xf32>
    %90 = tpu.matmul %6, %89, %cst_38 {dimension_numbers = #tpu.dot_dimension_numbers<[1], [0], [0], [1], [0, 0, 1, 1], [], []>} : vector<8x50xf32>, vector<50x256xf32>, vector<8x256xf32> -> vector<8x256xf32>
    %c0_39 = arith.constant 0 : index
    %c1280_40 = arith.constant 1280 : index
    %91 = vector.load %arg5[%c0_39, %c1280_40] : memref<1x2560xf32, #tpu.memory_space<vmem>>, vector<1x256xf32>
    %92 = vector.broadcast %91 : vector<1x256xf32> to vector<8x256xf32>
    %93 = arith.addf %90, %92 : vector<8x256xf32>
    %94 = vector.extract_strided_slice %93 {offsets = [0, 0], sizes = [8, 128], strides = [1, 1]} : vector<8x256xf32> to vector<8x128xf32>
    %95 = arith.subf %94, %12 : vector<8x128xf32>
    %cst_41 = arith.constant 8.000000e+01 : f32
    %96 = vector.broadcast %cst_41 : f32 to vector<8x128xf32>
    %97 = arith.minimumf %95, %96 : vector<8x128xf32>
    %98 = math.exp %97 : vector<8x128xf32>
    %99 = vector.extract_strided_slice %93 {offsets = [0, 128], sizes = [8, 128], strides = [1, 1]} : vector<8x256xf32> to vector<8x128xf32>
    %100 = arith.subf %99, %12 : vector<8x128xf32>
    %cst_42 = arith.constant 8.000000e+01 : f32
    %101 = vector.broadcast %cst_42 : f32 to vector<8x128xf32>
    %102 = arith.minimumf %100, %101 : vector<8x128xf32>
    %103 = math.exp %102 : vector<8x128xf32>
    %104 = arith.addf %98, %103 : vector<8x128xf32>
    %105 = arith.addf %71, %104 : vector<8x128xf32>
    %c0_43 = arith.constant 0 : index
    %c1536 = arith.constant 1536 : index
    %106 = vector.load %arg4[%c0_43, %c1536] : memref<50x2560xf32, #tpu.memory_space<vmem>>, vector<50x256xf32>
    %cst_44 = arith.constant dense<0.000000e+00> : vector<8x256xf32>
    %107 = tpu.matmul %6, %106, %cst_44 {dimension_numbers = #tpu.dot_dimension_numbers<[1], [0], [0], [1], [0, 0, 1, 1], [], []>} : vector<8x50xf32>, vector<50x256xf32>, vector<8x256xf32> -> vector<8x256xf32>
    %c0_45 = arith.constant 0 : index
    %c1536_46 = arith.constant 1536 : index
    %108 = vector.load %arg5[%c0_45, %c1536_46] : memref<1x2560xf32, #tpu.memory_space<vmem>>, vector<1x256xf32>
    %109 = vector.broadcast %108 : vector<1x256xf32> to vector<8x256xf32>
    %110 = arith.addf %107, %109 : vector<8x256xf32>
    %111 = vector.extract_strided_slice %110 {offsets = [0, 0], sizes = [8, 128], strides = [1, 1]} : vector<8x256xf32> to vector<8x128xf32>
    %112 = arith.subf %111, %12 : vector<8x128xf32>
    %cst_47 = arith.constant 8.000000e+01 : f32
    %113 = vector.broadcast %cst_47 : f32 to vector<8x128xf32>
    %114 = arith.minimumf %112, %113 : vector<8x128xf32>
    %115 = math.exp %114 : vector<8x128xf32>
    %116 = vector.extract_strided_slice %110 {offsets = [0, 128], sizes = [8, 128], strides = [1, 1]} : vector<8x256xf32> to vector<8x128xf32>
    %117 = arith.subf %116, %12 : vector<8x128xf32>
    %cst_48 = arith.constant 8.000000e+01 : f32
    %118 = vector.broadcast %cst_48 : f32 to vector<8x128xf32>
    %119 = arith.minimumf %117, %118 : vector<8x128xf32>
    %120 = math.exp %119 : vector<8x128xf32>
    %121 = arith.addf %115, %120 : vector<8x128xf32>
    %122 = arith.addf %88, %121 : vector<8x128xf32>
    %c0_49 = arith.constant 0 : index
    %c1792 = arith.constant 1792 : index
    %123 = vector.load %arg4[%c0_49, %c1792] : memref<50x2560xf32, #tpu.memory_space<vmem>>, vector<50x256xf32>
    %cst_50 = arith.constant dense<0.000000e+00> : vector<8x256xf32>
    %124 = tpu.matmul %6, %123, %cst_50 {dimension_numbers = #tpu.dot_dimension_numbers<[1], [0], [0], [1], [0, 0, 1, 1], [], []>} : vector<8x50xf32>, vector<50x256xf32>, vector<8x256xf32> -> vector<8x256xf32>
    %c0_51 = arith.constant 0 : index
    %c1792_52 = arith.constant 1792 : index
    %125 = vector.load %arg5[%c0_51, %c1792_52] : memref<1x2560xf32, #tpu.memory_space<vmem>>, vector<1x256xf32>
    %126 = vector.broadcast %125 : vector<1x256xf32> to vector<8x256xf32>
    %127 = arith.addf %124, %126 : vector<8x256xf32>
    %128 = vector.extract_strided_slice %127 {offsets = [0, 0], sizes = [8, 128], strides = [1, 1]} : vector<8x256xf32> to vector<8x128xf32>
    %129 = arith.subf %128, %12 : vector<8x128xf32>
    %cst_53 = arith.constant 8.000000e+01 : f32
    %130 = vector.broadcast %cst_53 : f32 to vector<8x128xf32>
    %131 = arith.minimumf %129, %130 : vector<8x128xf32>
    %132 = math.exp %131 : vector<8x128xf32>
    %133 = vector.extract_strided_slice %127 {offsets = [0, 128], sizes = [8, 128], strides = [1, 1]} : vector<8x256xf32> to vector<8x128xf32>
    %134 = arith.subf %133, %12 : vector<8x128xf32>
    %cst_54 = arith.constant 8.000000e+01 : f32
    %135 = vector.broadcast %cst_54 : f32 to vector<8x128xf32>
    %136 = arith.minimumf %134, %135 : vector<8x128xf32>
    %137 = math.exp %136 : vector<8x128xf32>
    %138 = arith.addf %132, %137 : vector<8x128xf32>
    %139 = arith.addf %105, %138 : vector<8x128xf32>
    %c0_55 = arith.constant 0 : index
    %c2048 = arith.constant 2048 : index
    %140 = vector.load %arg4[%c0_55, %c2048] : memref<50x2560xf32, #tpu.memory_space<vmem>>, vector<50x256xf32>
    %cst_56 = arith.constant dense<0.000000e+00> : vector<8x256xf32>
    %141 = tpu.matmul %6, %140, %cst_56 {dimension_numbers = #tpu.dot_dimension_numbers<[1], [0], [0], [1], [0, 0, 1, 1], [], []>} : vector<8x50xf32>, vector<50x256xf32>, vector<8x256xf32> -> vector<8x256xf32>
    %c0_57 = arith.constant 0 : index
    %c2048_58 = arith.constant 2048 : index
    %142 = vector.load %arg5[%c0_57, %c2048_58] : memref<1x2560xf32, #tpu.memory_space<vmem>>, vector<1x256xf32>
    %143 = vector.broadcast %142 : vector<1x256xf32> to vector<8x256xf32>
    %144 = arith.addf %141, %143 : vector<8x256xf32>
    %145 = vector.extract_strided_slice %144 {offsets = [0, 0], sizes = [8, 128], strides = [1, 1]} : vector<8x256xf32> to vector<8x128xf32>
    %146 = arith.subf %145, %12 : vector<8x128xf32>
    %cst_59 = arith.constant 8.000000e+01 : f32
    %147 = vector.broadcast %cst_59 : f32 to vector<8x128xf32>
    %148 = arith.minimumf %146, %147 : vector<8x128xf32>
    %149 = math.exp %148 : vector<8x128xf32>
    %150 = vector.extract_strided_slice %144 {offsets = [0, 128], sizes = [8, 128], strides = [1, 1]} : vector<8x256xf32> to vector<8x128xf32>
    %151 = arith.subf %150, %12 : vector<8x128xf32>
    %cst_60 = arith.constant 8.000000e+01 : f32
    %152 = vector.broadcast %cst_60 : f32 to vector<8x128xf32>
    %153 = arith.minimumf %151, %152 : vector<8x128xf32>
    %154 = math.exp %153 : vector<8x128xf32>
    %155 = arith.addf %149, %154 : vector<8x128xf32>
    %156 = arith.addf %122, %155 : vector<8x128xf32>
    %c0_61 = arith.constant 0 : index
    %c2304 = arith.constant 2304 : index
    %157 = vector.load %arg4[%c0_61, %c2304] : memref<50x2560xf32, #tpu.memory_space<vmem>>, vector<50x256xf32>
    %cst_62 = arith.constant dense<0.000000e+00> : vector<8x256xf32>
    %158 = tpu.matmul %6, %157, %cst_62 {dimension_numbers = #tpu.dot_dimension_numbers<[1], [0], [0], [1], [0, 0, 1, 1], [], []>} : vector<8x50xf32>, vector<50x256xf32>, vector<8x256xf32> -> vector<8x256xf32>
    %c0_63 = arith.constant 0 : index
    %c2304_64 = arith.constant 2304 : index
    %159 = vector.load %arg5[%c0_63, %c2304_64] : memref<1x2560xf32, #tpu.memory_space<vmem>>, vector<1x256xf32>
    %160 = vector.broadcast %159 : vector<1x256xf32> to vector<8x256xf32>
    %161 = arith.addf %158, %160 : vector<8x256xf32>
    %162 = vector.extract_strided_slice %161 {offsets = [0, 0], sizes = [8, 128], strides = [1, 1]} : vector<8x256xf32> to vector<8x128xf32>
    %163 = arith.subf %162, %12 : vector<8x128xf32>
    %cst_65 = arith.constant 8.000000e+01 : f32
    %164 = vector.broadcast %cst_65 : f32 to vector<8x128xf32>
    %165 = arith.minimumf %163, %164 : vector<8x128xf32>
    %166 = math.exp %165 : vector<8x128xf32>
    %167 = vector.extract_strided_slice %161 {offsets = [0, 128], sizes = [8, 128], strides = [1, 1]} : vector<8x256xf32> to vector<8x128xf32>
    %168 = arith.subf %167, %12 : vector<8x128xf32>
    %cst_66 = arith.constant 8.000000e+01 : f32
    %169 = vector.broadcast %cst_66 : f32 to vector<8x128xf32>
    %170 = arith.minimumf %168, %169 : vector<8x128xf32>
    %171 = math.exp %170 : vector<8x128xf32>
    %172 = arith.addf %166, %171 : vector<8x128xf32>
    %173 = arith.addf %139, %172 : vector<8x128xf32>
    %174 = arith.addf %156, %173 : vector<8x128xf32>
    %175 = tpu.reciprocal %174 {approx = true} : vector<8x128xf32> -> vector<8x128xf32>
    %176 = vector.extract_strided_slice %175 {offsets = [0, 0], sizes = [8, 66], strides = [1, 1]} : vector<8x128xf32> to vector<8x66xf32>
    %177 = arith.mulf %0, %176 : vector<8x66xf32>
    %c0_67 = arith.constant 0 : index
    %c0_68 = arith.constant 0 : index
    %178 = vector.load %arg6[%c0_67, %c0_68] : memref<66x50xf32, #tpu.memory_space<vmem>>, vector<66x50xf32>
    %cst_69 = arith.constant dense<0.000000e+00> : vector<8x50xf32>
    %179 = tpu.matmul %177, %178, %cst_69 {dimension_numbers = #tpu.dot_dimension_numbers<[1], [0], [0], [1], [0, 0, 1, 1], [], []>} : vector<8x66xf32>, vector<66x50xf32>, vector<8x50xf32> -> vector<8x50xf32>
    %c0_70 = arith.constant 0 : index
    %c0_71 = arith.constant 0 : index
    %180 = vector.load %arg7[%c0_70, %c0_71] : memref<1x50xf32, #tpu.memory_space<vmem>>, vector<1x50xf32>
    %181 = vector.broadcast %180 : vector<1x50xf32> to vector<8x50xf32>
    %182 = arith.addf %179, %181 : vector<8x50xf32>
    %cst_72 = arith.constant 0.000000e+00 : f32
    %183 = vector.broadcast %cst_72 : f32 to vector<8x50xf32>
    %184 = arith.maximumf %182, %183 : vector<8x50xf32>
    %c0_73 = arith.constant 0 : index
    %c0_74 = arith.constant 0 : index
    %185 = vector.load %arg8[%c0_73, %c0_74] : memref<50x2xf32, #tpu.memory_space<vmem>>, vector<50x2xf32>
    %cst_75 = arith.constant dense<0.000000e+00> : vector<8x2xf32>
    %186 = tpu.matmul %184, %185, %cst_75 {dimension_numbers = #tpu.dot_dimension_numbers<[1], [0], [0], [1], [0, 0, 1, 1], [], []>} : vector<8x50xf32>, vector<50x2xf32>, vector<8x2xf32> -> vector<8x2xf32>
    %c0_76 = arith.constant 0 : index
    %c0_77 = arith.constant 0 : index
    %187 = vector.load %arg9[%c0_76, %c0_77] : memref<1x2xf32, #tpu.memory_space<vmem>>, vector<1x2xf32>
    %188 = vector.broadcast %187 : vector<1x2xf32> to vector<8x2xf32>
    %189 = arith.addf %186, %188 : vector<8x2xf32>
    %c0_78 = arith.constant 0 : index
    %c0_79 = arith.constant 0 : index
    %190 = vector.load %arg10[%c0_78, %c0_79] : memref<8x2xf32, #tpu.memory_space<vmem>>, vector<8x2xf32>
    tpu.vector_store %arg10[%c0_78, %c0_79], %189 {strides = array<i32>} : memref<8x2xf32, #tpu.memory_space<vmem>>, vector<8x2xf32>,
    return
  }
  func.func @transform_0(%arg0: i32) -> (i32, i32) {
    %c0_i32 = arith.constant 0 : i32
    %c0_i32_0 = arith.constant 0 : i32
    return %arg0, %c0_i32 : i32, i32
  }
  func.func @transform_1(%arg0: i32) -> (i32, i32) {
    %c0_i32 = arith.constant 0 : i32
    %c0_i32_0 = arith.constant 0 : i32
    %c0_i32_1 = arith.constant 0 : i32
    return %c0_i32, %c0_i32_0 : i32, i32
  }
  func.func @transform_2(%arg0: i32) -> (i32, i32) {
    %c0_i32 = arith.constant 0 : i32
    %c0_i32_0 = arith.constant 0 : i32
    %c0_i32_1 = arith.constant 0 : i32
    return %c0_i32, %c0_i32_0 : i32, i32
  }
  func.func @transform_3(%arg0: i32) -> (i32, i32) {
    %c0_i32 = arith.constant 0 : i32
    %c0_i32_0 = arith.constant 0 : i32
    %c0_i32_1 = arith.constant 0 : i32
    return %c0_i32, %c0_i32_0 : i32, i32
  }
  func.func @transform_4(%arg0: i32) -> (i32, i32) {
    %c0_i32 = arith.constant 0 : i32
    %c0_i32_0 = arith.constant 0 : i32
    %c0_i32_1 = arith.constant 0 : i32
    return %c0_i32, %c0_i32_0 : i32, i32
  }
  func.func @transform_5(%arg0: i32) -> (i32, i32) {
    %c0_i32 = arith.constant 0 : i32
    %c0_i32_0 = arith.constant 0 : i32
    %c0_i32_1 = arith.constant 0 : i32
    return %c0_i32, %c0_i32_0 : i32, i32
  }
  func.func @transform_6(%arg0: i32) -> (i32, i32) {
    %c0_i32 = arith.constant 0 : i32
    %c0_i32_0 = arith.constant 0 : i32
    %c0_i32_1 = arith.constant 0 : i32
    return %c0_i32, %c0_i32_0 : i32, i32
  }
  func.func @transform_7(%arg0: i32) -> (i32, i32) {
    %c0_i32 = arith.constant 0 : i32
    %c0_i32_0 = arith.constant 0 : i32
    %c0_i32_1 = arith.constant 0 : i32
    return %c0_i32, %c0_i32_0 : i32, i32
  }
  func.func @transform_8(%arg0: i32) -> (i32, i32) {
    %c0_i32 = arith.constant 0 : i32
    %c0_i32_0 = arith.constant 0 : i32
    %c0_i32_1 = arith.constant 0 : i32
    return %c0_i32, %c0_i32_0 : i32, i32
  }
  func.func @transform_9(%arg0: i32) -> (i32, i32) {
    %c0_i32 = arith.constant 0 : i32
    %c0_i32_0 = arith.constant 0 : i32
    return %arg0, %c0_i32 : i32, i32
  }
}

</mosaic_0001>

<llo_original>
// kernel: tpu_custom_call.1
$region0: #{tpu_custom_call.1}
  #allocation0 [shape = 'u32[]', space=smem, size = 0x4, offset = 0x4, fixed_abs, tag = 'smem constant byte address 0x4 - core index']
  #allocation1 [shape = 'u32[144,128]{1,0:T(1,128)}', space=vmem, size = 0x12000, scoped, tag = 'internal scratch']
  %s0 = inlined_call_operand.vmem [shape: f32[8,66], index: 0, kind: input, shape index: {}]
  %s1 = inlined_call_operand.vmem [shape: f32[66,50], index: 1, kind: input, shape index: {}]
  %s2 = inlined_call_operand.vmem [shape: f32[1,50], index: 2, kind: input, shape index: {}]
  %s3 = inlined_call_operand.hbm [shape: f32[50,2560], index: 3, kind: input, shape index: {}]
  %s4 = inlined_call_operand.vmem [shape: f32[1,2560], index: 4, kind: input, shape index: {}]
  %s5 = inlined_call_operand.vmem [shape: f32[66,50], index: 5, kind: input, shape index: {}]
  %s6 = inlined_call_operand.vmem [shape: f32[1,50], index: 6, kind: input, shape index: {}]
  %s7 = inlined_call_operand.vmem [shape: f32[50,2], index: 7, kind: input, shape index: {}]
  %s8 = inlined_call_operand.vmem [shape: f32[1,2], index: 8, kind: input, shape index: {}]
  %s9 = inlined_call_operand.vmem [shape: f32[8,2], index: 9, kind: output, shape index: {}]
  %s10 = sld [smem:[#allocation0]]
  $region50: #{tpu_custom_call.1} parent=0
    _
  %s12 = ssub.s32 1, %s10
  %s13 = scalar_select 0, %s12, %s10
  $region1: #{tpu_custom_call.1} parent=0
    #allocation2 [shape = 'u8[573440]{0}', space=vmem, size = 0x8c000, scoped, tag = 'input window, operand 3, single buffered']
    #allocation3 [shape = 's32[1]{0}', space=sflag, size = 0x4, scoped, tag = 'scoped memory for tpu_custom_call.1']
    %14 = vsyncpa [#allocation3], 0
    // Predicated region
    $region2: #{tpu_custom_call.1} parent=1 // pred_check
      _
    $region3: #{tpu_custom_call.1} parent=1 // pred_check_branch
      %16 = sbr.rel (0) target = $region5
    $region4: #{tpu_custom_call.1} parent=1 // pred_region
      _
    $region5: #{tpu_custom_call.1} parent=1 // pred_fallthru
      _
    // Predicated region
    $region6: #{tpu_custom_call.1} parent=1 // pred_check
      _
    $region7: #{tpu_custom_call.1} parent=1 // pred_check_branch
      %18 = sbr.rel (0) target = $region9
    $region8: #{tpu_custom_call.1} parent=1 // pred_region
      _
    $region9: #{tpu_custom_call.1} parent=1 // pred_fallthru
      _
    // Predicated region
    $region10: #{tpu_custom_call.1} parent=1 // pred_check
      _
    $region11: #{tpu_custom_call.1} parent=1 // pred_check_branch
      %20 = sbr.rel (0) target = $region13
    $region12: #{tpu_custom_call.1} parent=1 // pred_region
      _
    $region13: #{tpu_custom_call.1} parent=1 // pred_fallthru
      _
    // Predicated region
    $region14: #{tpu_custom_call.1} parent=1 // pred_check
      _
    $region15: #{tpu_custom_call.1} parent=1 // pred_check_branch
      %22 = sbr.rel (0) target = $region17
    $region16: #{tpu_custom_call.1} parent=1 // pred_region
      %s24 = ssub.s32 17920, 17920
      %25 = vsyncadd [#allocation3], %s24
      %s26 = sshll.u32 [#allocation2], 4
      %s27 = int_to_ptr.vmem [resolvable:$true] %s26
      %32 = dma.hbm_to_vmem [thread:$0]  %s3, 17920, %s27, [#allocation3], 2560, 2560, 160
    $region17: #{tpu_custom_call.1} parent=1 // pred_fallthru
      _
    // Predicated region
    $region18: #{tpu_custom_call.1} parent=1 // pred_check
      _
    $region19: #{tpu_custom_call.1} parent=1 // pred_check_branch
      %34 = sbr.rel (0) target = $region21
    $region20: #{tpu_custom_call.1} parent=1 // pred_region
      _
    $region21: #{tpu_custom_call.1} parent=1 // pred_fallthru
      _
    // Predicated region
    $region22: #{tpu_custom_call.1} parent=1 // pred_check
      _
    $region23: #{tpu_custom_call.1} parent=1 // pred_check_branch
      %36 = sbr.rel (0) target = $region25
    $region24: #{tpu_custom_call.1} parent=1 // pred_region
      _
    $region25: #{tpu_custom_call.1} parent=1 // pred_fallthru
      _
    // Predicated region
    $region26: #{tpu_custom_call.1} parent=1 // pred_check
      _
    $region27: #{tpu_custom_call.1} parent=1 // pred_check_branch
      %38 = sbr.rel (0) target = $region29
    $region28: #{tpu_custom_call.1} parent=1 // pred_region
      _
    $region29: #{tpu_custom_call.1} parent=1 // pred_fallthru
      _
    // Predicated region
    $region30: #{tpu_custom_call.1} parent=1 // pred_check
      _
    $region31: #{tpu_custom_call.1} parent=1 // pred_check_branch
      %40 = sbr.rel (0) target = $region33
    $region32: #{tpu_custom_call.1} parent=1 // pred_region
      _
    $region33: #{tpu_custom_call.1} parent=1 // pred_fallthru
      _
    // Predicated region
    $region34: #{tpu_custom_call.1} parent=1 // pred_check
      _
    $region35: #{tpu_custom_call.1} parent=1 // pred_check_branch
      %42 = sbr.rel (0) target = $region37
    $region36: #{tpu_custom_call.1} parent=1 // pred_region
      _
    $region37: #{tpu_custom_call.1} parent=1 // pred_fallthru
      _
    // Predicated region
    $region38: #{tpu_custom_call.1} parent=1 // pred_check
      _
    $region39: #{tpu_custom_call.1} parent=1 // pred_check_branch
      %44 = sbr.rel (0) target = $region41
    $region40: #{tpu_custom_call.1} parent=1 // pred_region
      %45 = dma.done [#allocation3], 17920
    $region41: #{tpu_custom_call.1} parent=1 // pred_fallthru
      _
    %v46 = vld [vmem:[%s0] sm:$0xff]
    %v47 = vld [vmem:[%s1] sm:$0xff]
    %v48 = vld [vmem:[%s1 + $0x8] sm:$0xff]
    %v49 = vld [vmem:[%s1 + $0x10] sm:$0xff]
    %v50 = vld [vmem:[%s1 + $0x18] sm:$0xff]
    %v51 = vld [vmem:[%s1 + $0x20] sm:$0xff]
    %v52 = vld [vmem:[%s1 + $0x28] sm:$0xff]
    %v53 = vld [vmem:[%s1 + $0x30] sm:$0xff]
    %v54 = vld [vmem:[%s1 + $0x38] sm:$0xff]
    %v55 = vld [vmem:[%s1 + $0x40] sm:$0x3]
    %v56 = vld [vmem:[%s2] sm:$0x1]
    %v58 = vlaneseq
    %v59 = vshrl.u32 %v58, 7
    %v60 = vsub.s32 0, %v59
    %v61 = vrot.slane %v56, %v60
    %vm63 = vcmask 539648
    %v65 = vsel %vm63, %v46, 0
    %vm67 = vcmask 1041408
    %v69 = vsel %vm67, %v55, 0
    %71 = vmatprep.subr.mxu0 0.0
    %72 = vmatpush1.msra.mxu0 %v47
    %73 = vmatprep.subr.mxu0 0.0
    %74 = vmatpush1.msra.mxu0 %v48
    %75 = vmatprep.subr.mxu0 0.0
    %76 = vmatpush1.msra.mxu0 %v49
    %77 = vmatprep.subr.mxu0 0.0
    %78 = vmatpush1.msra.mxu0 %v50
    %79 = vmatprep.subr.mxu0 0.0
    %80 = vmatpush1.msra.mxu0 %v51
    %81 = vmatprep.subr.mxu0 0.0
    %82 = vmatpush1.msra.mxu0 %v52
    %83 = vmatprep.subr.mxu0 0.0
    %84 = vmatpush1.msra.mxu0 %v53
    %85 = vmatprep.subr.mxu0 0.0
    %86 = vmatpush1.msra.mxu0 %v54
    %87 = vmatprep.subr.mxu0 0.0
    %88 = vmatpush1.msra.mxu0 %v69
    %89 = vmatprep.subr.mxu0 0.0
    %90 = vmatpush1.msra.mxu0 0.0
    %91 = vmatprep.subr.mxu0 0.0
    %92 = vmatpush1.msra.mxu0 0.0
    %93 = vmatprep.subr.mxu0 0.0
    %94 = vmatpush1.msra.mxu0 0.0
    %95 = vmatprep.subr.mxu0 0.0
    %96 = vmatpush1.msra.mxu0 0.0
    %97 = vmatprep.subr.mxu0 0.0
    %98 = vmatpush1.msra.mxu0 0.0
    %99 = vmatprep.subr.mxu0 0.0
    %100 = vmatpush1.msra.mxu0 0.0
    %101 = vmatprep.subr.mxu0 0.0
    %102 = vmatpush1.msra.mxu0 0.0
    %103 = vmatprep.subr.mxu0 0.0
    %104 = vmatpush1.msra.mxu0 0.0
    %105 = vmatprep.subr.mxu0 0.0
    %106 = vmatpush1.msra.mxu0 0.0
    %107 = vmatprep.subr.mxu0 0.0
    %108 = vmatpush1.msra.mxu0 0.0
    %109 = vmatprep.subr.mxu0 0.0
    %110 = vmatpush1.msra.mxu0 0.0
    %111 = vmatprep.subr.mxu0 0.0
    %112 = vmatpush1.msra.mxu0 0.0
    %113 = vmatprep.subr.mxu0 0.0
    %114 = vmatpush1.msra.mxu0 0.0
    %115 = vmatprep.subr.mxu0 0.0
    %116 = vmatpush1.msra.mxu0 0.0
    %117 = vmatprep.subr.mxu0 0.0
    %118 = vmatpush1.msra.mxu0 0.0
    %119 = vmatprep.subr.mxu0 0.0
    %120 = vmatpush1.msra.mxu0 0.0
    %121 = vmatprep.subr.mxu0 0.0
    %122 = vmatpush1.msra.mxu0 0.0
    %123 = vmatprep.subr.mxu0 0.0
    %124 = vmatpush1.msra.mxu0 0.0
    %125 = vmatprep.subr.mxu0 0.0
    %126 = vmatpush1.msra.mxu0 0.0
    %127 = vmatprep.subr.mxu0 0.0
    %128 = vmatpush1.msra.mxu0 0.0
    %129 = vmatprep.subr.mxu0 0.0
    %130 = vmatpush1.msra.mxu0 0.0
    %131 = vmatprep.subr.mxu0 0.0
    %132 = vmatpush1.msra.mxu0 0.0
    %133 = vmatprep.subr.mxu0 0.0
    %134 = vmatpush1.msra.mxu0 0.0
    %135 = vmatprep.mubr.f32.mxu0 0.0
    %136 = vmatmul.mubr.f32.gmra.mrb[0].mxu0 %v65
    %v137 = vpop.f32.mrb[0].mxu0
    %v138 = vadd.f32 %v61, %v137
    %v139 = vpop.f32.mrb[0].mxu0
    %140 = vdwg.mxu0
    %v141 = vtanh.pop %v138
    %v142 = vld [vmem:[#allocation2] sm:$0xff]
    %v143 = vld [vmem:[#allocation2 + $0x8] sm:$0xff]
    %v144 = vld [vmem:[#allocation2 + $0xa0] sm:$0xff]
    %v145 = vld [vmem:[#allocation2 + $0xa8] sm:$0xff]
    %v146 = vld [vmem:[#allocation2 + $0x140] sm:$0xff]
    %v147 = vld [vmem:[#allocation2 + $0x148] sm:$0xff]
    %v148 = vld [vmem:[#allocation2 + $0x1e0] sm:$0xff]
    %v149 = vld [vmem:[#allocation2 + $0x1e8] sm:$0xff]
    %v150 = vld [vmem:[#allocation2 + $0x280] sm:$0xff]
    %v151 = vld [vmem:[#allocation2 + $0x288] sm:$0xff]
    %v152 = vld [vmem:[#allocation2 + $0x320] sm:$0xff]
    %v153 = vld [vmem:[#allocation2 + $0x328] sm:$0xff]
    %v154 = vld [vmem:[#allocation2 + $0x3c0] sm:$0x3]
    %v155 = vld [vmem:[#allocation2 + $0x3c8] sm:$0x3]
    %v156 = vld [vmem:[%s4] sm:$0x3]
    %v158 = vlaneseq
    %v159 = vshrl.u32 %v158, 7
    %v160 = vsub.s32 0, %v159
    %v161 = vrot.slane %v156, %v160
    %v162 = vlaneseq
    %v163 = vshrl.u32 %v162, 7
    %v164 = vsub.s32 1, %v163
    %v165 = vrot.slane %v156, %v164
    %vm168 = vcmask 408576
    %v170 = vsel %vm168, %v141, 0
    %v173 = vsel %vm67, %v154, 0
    %v176 = vsel %vm67, %v155, 0
    %178 = vmatprep.subr.mxu0 %v143
    %179 = vmatpush1.msra.mxu0 %v142
    %180 = vmatprep.subr.mxu0 %v145
    %181 = vmatpush1.msra.mxu0 %v144
    %182 = vmatprep.subr.mxu0 %v147
    %183 = vmatpush1.msra.mxu0 %v146
    %184 = vmatprep.subr.mxu0 %v149
    %185 = vmatpush1.msra.mxu0 %v148
    %186 = vmatprep.subr.mxu0 %v151
    %187 = vmatpush1.msra.mxu0 %v150
    %188 = vmatprep.subr.mxu0 %v153
    %189 = vmatpush1.msra.mxu0 %v152
    %190 = vmatprep.subr.mxu0 %v176
    %191 = vmatpush1.msra.mxu0 %v173
    %192 = vmatprep.subr.mxu0 0.0
    %193 = vmatpush1.msra.mxu0 0.0
    %194 = vmatprep.subr.mxu0 0.0
    %195 = vmatpush1.msra.mxu0 0.0
    %196 = vmatprep.subr.mxu0 0.0
    %197 = vmatpush1.msra.mxu0 0.0
    %198 = vmatprep.subr.mxu0 0.0
    %199 = vmatpush1.msra.mxu0 0.0
    %200 = vmatprep.subr.mxu0 0.0
    %201 = vmatpush1.msra.mxu0 0.0
    %202 = vmatprep.subr.mxu0 0.0
    %203 = vmatpush1.msra.mxu0 0.0
    %204 = vmatprep.subr.mxu0 0.0
    %205 = vmatpush1.msra.mxu0 0.0
    %206 = vmatprep.subr.mxu0 0.0
    %207 = vmatpush1.msra.mxu0 0.0
    %208 = vmatprep.subr.mxu0 0.0
    %209 = vmatpush1.msra.mxu0 0.0
    %210 = vmatprep.subr.mxu0 0.0
    %211 = vmatpush1.msra.mxu0 0.0
    %212 = vmatprep.subr.mxu0 0.0
    %213 = vmatpush1.msra.mxu0 0.0
    %214 = vmatprep.subr.mxu0 0.0
    %215 = vmatpush1.msra.mxu0 0.0
    %216 = vmatprep.subr.mxu0 0.0
    %217 = vmatpush1.msra.mxu0 0.0
    %218 = vmatprep.subr.mxu0 0.0
    %219 = vmatpush1.msra.mxu0 0.0
    %220 = vmatprep.subr.mxu0 0.0
    %221 = vmatpush1.msra.mxu0 0.0
    %222 = vmatprep.subr.mxu0 0.0
    %223 = vmatpush1.msra.mxu0 0.0
    %224 = vmatprep.subr.mxu0 0.0
    %225 = vmatpush1.msra.mxu0 0.0
    %226 = vmatprep.subr.mxu0 0.0
    %227 = vmatpush1.msra.mxu0 0.0
    %228 = vmatprep.subr.mxu0 0.0
    %229 = vmatpush1.msra.mxu0 0.0
    %230 = vmatprep.subr.mxu0 0.0
    %231 = vmatpush1.msra.mxu0 0.0
    %232 = vmatprep.subr.mxu0 0.0
    %233 = vmatpush1.msra.mxu0 0.0
    %234 = vmatprep.subr.mxu0 0.0
    %235 = vmatpush1.msra.mxu0 0.0
    %236 = vmatprep.subr.mxu0 0.0
    %237 = vmatpush1.msra.mxu0 0.0
    %238 = vmatprep.subr.mxu0 0.0
    %239 = vmatpush1.msra.mxu0 0.0
    %240 = vmatprep.subr.mxu0 0.0
    %241 = vmatpush1.msra.mxu0 0.0
    %242 = vmatprep.mubr.f32.mxu0 0.0
    %243 = vmatmul.mubr.f32.gmra.mrb[0].mxu0 %v170
    %v244 = vpop.f32.mrb[0].mxu0
    %v245 = vadd.f32 %v161, %v244
    %v246 = vpop.f32.mrb[0].mxu0
    %v247 = vadd.f32 %v165, %v246
    %248 = vdwg.mxu0
    %v249 = vsub.f32 %v247, %v245
    %v250 = vmin.f32 %v249, 80.0
    %v251 = vmul.f32 %v250, 1.442695
    %v252 = vpow.pop %v251
    %v253 = vadd.f32 %v252, 1.0
    %v254 = vld [vmem:[#allocation2 + $0x10] sm:$0xff]
    %v255 = vld [vmem:[#allocation2 + $0x18] sm:$0xff]
    %v256 = vld [vmem:[#allocation2 + $0xb0] sm:$0xff]
    %v257 = vld [vmem:[#allocation2 + $0xb8] sm:$0xff]
    %v258 = vld [vmem:[#allocation2 + $0x150] sm:$0xff]
    %v259 = vld [vmem:[#allocation2 + $0x158] sm:$0xff]
    %v260 = vld [vmem:[#allocation2 + $0x1f0] sm:$0xff]
    %v261 = vld [vmem:[#allocation2 + $0x1f8] sm:$0xff]
    %v262 = vld [vmem:[#allocation2 + $0x290] sm:$0xff]
    %v263 = vld [vmem:[#allocation2 + $0x298] sm:$0xff]
    %v264 = vld [vmem:[#allocation2 + $0x330] sm:$0xff]
    %v265 = vld [vmem:[#allocation2 + $0x338] sm:$0xff]
    %v266 = vld [vmem:[#allocation2 + $0x3d0] sm:$0x3]
    %v267 = vld [vmem:[#allocation2 + $0x3d8] sm:$0x3]
    %v268 = vld [vmem:[%s4 + $0x2] sm:$0x3]
    %v270 = vlaneseq
    %v271 = vshrl.u32 %v270, 7
    %v272 = vsub.s32 0, %v271
    %v273 = vrot.slane %v268, %v272
    %v274 = vlaneseq
    %v275 = vshrl.u32 %v274, 7
    %v276 = vsub.s32 1, %v275
    %v277 = vrot.slane %v268, %v276
    %v281 = vsel %vm67, %v266, 0
    %v284 = vsel %vm67, %v267, 0
    %286 = vmatprep.subr.mxu0 %v255
    %287 = vmatpush1.msra.mxu0 %v254
    %288 = vmatprep.subr.mxu0 %v257
    %289 = vmatpush1.msra.mxu0 %v256
    %290 = vmatprep.subr.mxu0 %v259
    %291 = vmatpush1.msra.mxu0 %v258
    %292 = vmatprep.subr.mxu0 %v261
    %293 = vmatpush1.msra.mxu0 %v260
    %294 = vmatprep.subr.mxu0 %v263
    %295 = vmatpush1.msra.mxu0 %v262
    %296 = vmatprep.subr.mxu0 %v265
    %297 = vmatpush1.msra.mxu0 %v264
    %298 = vmatprep.subr.mxu0 %v284
    %299 = vmatpush1.msra.mxu0 %v281
    %300 = vmatprep.subr.mxu0 0.0
    %301 = vmatpush1.msra.mxu0 0.0
    %302 = vmatprep.subr.mxu0 0.0
    %303 = vmatpush1.msra.mxu0 0.0
    %304 = vmatprep.subr.mxu0 0.0
    %305 = vmatpush1.msra.mxu0 0.0
    %306 = vmatprep.subr.mxu0 0.0
    %307 = vmatpush1.msra.mxu0 0.0
    %308 = vmatprep.subr.mxu0 0.0
    %309 = vmatpush1.msra.mxu0 0.0
    %310 = vmatprep.subr.mxu0 0.0
    %311 = vmatpush1.msra.mxu0 0.0
    %312 = vmatprep.subr.mxu0 0.0
    %313 = vmatpush1.msra.mxu0 0.0
    %314 = vmatprep.subr.mxu0 0.0
    %315 = vmatpush1.msra.mxu0 0.0
    %316 = vmatprep.subr.mxu0 0.0
    %317 = vmatpush1.msra.mxu0 0.0
    %318 = vmatprep.subr.mxu0 0.0
    %319 = vmatpush1.msra.mxu0 0.0
    %320 = vmatprep.subr.mxu0 0.0
    %321 = vmatpush1.msra.mxu0 0.0
    %322 = vmatprep.subr.mxu0 0.0
    %323 = vmatpush1.msra.mxu0 0.0
    %324 = vmatprep.subr.mxu0 0.0
    %325 = vmatpush1.msra.mxu0 0.0
    %326 = vmatprep.subr.mxu0 0.0
    %327 = vmatpush1.msra.mxu0 0.0
    %328 = vmatprep.subr.mxu0 0.0
    %329 = vmatpush1.msra.mxu0 0.0
    %330 = vmatprep.subr.mxu0 0.0
    %331 = vmatpush1.msra.mxu0 0.0
    %332 = vmatprep.subr.mxu0 0.0
    %333 = vmatpush1.msra.mxu0 0.0
    %334 = vmatprep.subr.mxu0 0.0
    %335 = vmatpush1.msra.mxu0 0.0
    %336 = vmatprep.subr.mxu0 0.0
    %337 = vmatpush1.msra.mxu0 0.0
    %338 = vmatprep.subr.mxu0 0.0
    %339 = vmatpush1.msra.mxu0 0.0
    %340 = vmatprep.subr.mxu0 0.0
    %341 = vmatpush1.msra.mxu0 0.0
    %342 = vmatprep.subr.mxu0 0.0
    %343 = vmatpush1.msra.mxu0 0.0
    %344 = vmatprep.subr.mxu0 0.0
    %345 = vmatpush1.msra.mxu0 0.0
    %346 = vmatprep.subr.mxu0 0.0
    %347 = vmatpush1.msra.mxu0 0.0
    %348 = vmatprep.subr.mxu0 0.0
    %349 = vmatpush1.msra.mxu0 0.0
    %350 = vmatprep.mubr.f32.mxu0 0.0
    %351 = vmatmul.mubr.f32.gmra.mrb[0].mxu0 %v170
    %v352 = vpop.f32.mrb[0].mxu0
    %v353 = vadd.f32 %v273, %v352
    %v354 = vpop.f32.mrb[0].mxu0
    %v355 = vadd.f32 %v277, %v354
    %356 = vdwg.mxu0
    %v357 = vsub.f32 %v353, %v245
    %v358 = vmin.f32 %v357, 80.0
    %v359 = vmul.f32 %v358, 1.442695
    %v360 = vpow.pop %v359
    %v361 = vsub.f32 %v355, %v245
    %v362 = vmin.f32 %v361, 80.0
    %v363 = vmul.f32 %v362, 1.442695
    %v364 = vpow.pop %v363
    %v365 = vadd.f32 %v360, %v364
    %v366 = vadd.f32 %v365, 0.0
    %v367 = vld [vmem:[#allocation2 + $0x20] sm:$0xff]
    %v368 = vld [vmem:[#allocation2 + $0x28] sm:$0xff]
    %v369 = vld [vmem:[#allocation2 + $0xc0] sm:$0xff]
    %v370 = vld [vmem:[#allocation2 + $0xc8] sm:$0xff]
    %v371 = vld [vmem:[#allocation2 + $0x160] sm:$0xff]
    %v372 = vld [vmem:[#allocation2 + $0x168] sm:$0xff]
    %v373 = vld [vmem:[#allocation2 + $0x200] sm:$0xff]
    %v374 = vld [vmem:[#allocation2 + $0x208] sm:$0xff]
    %v375 = vld [vmem:[#allocation2 + $0x2a0] sm:$0xff]
    %v376 = vld [vmem:[#allocation2 + $0x2a8] sm:$0xff]
    %v377 = vld [vmem:[#allocation2 + $0x340] sm:$0xff]
    %v378 = vld [vmem:[#allocation2 + $0x348] sm:$0xff]
    %v379 = vld [vmem:[#allocation2 + $0x3e0] sm:$0x3]
    %v380 = vld [vmem:[#allocation2 + $0x3e8] sm:$0x3]
    %v381 = vld [vmem:[%s4 + $0x4] sm:$0x3]
    %v383 = vlaneseq
    %v384 = vshrl.u32 %v383, 7
    %v385 = vsub.s32 0, %v384
    %v386 = vrot.slane %v381, %v385
    %v387 = vlaneseq
    %v388 = vshrl.u32 %v387, 7
    %v389 = vsub.s32 1, %v388
    %v390 = vrot.slane %v381, %v389
    %v394 = vsel %vm67, %v379, 0
    %v397 = vsel %vm67, %v380, 0
    %399 = vmatprep.subr.mxu0 %v368
    %400 = vmatpush1.msra.mxu0 %v367
    %401 = vmatprep.subr.mxu0 %v370
    %402 = vmatpush1.msra.mxu0 %v369
    %403 = vmatprep.subr.mxu0 %v372
    %404 = vmatpush1.msra.mxu0 %v371
    %405 = vmatprep.subr.mxu0 %v374
    %406 = vmatpush1.msra.mxu0 %v373
    %407 = vmatprep.subr.mxu0 %v376
    %408 = vmatpush1.msra.mxu0 %v375
    %409 = vmatprep.subr.mxu0 %v378
    %410 = vmatpush1.msra.mxu0 %v377
    %411 = vmatprep.subr.mxu0 %v397
    %412 = vmatpush1.msra.mxu0 %v394
    %413 = vmatprep.subr.mxu0 0.0
    %414 = vmatpush1.msra.mxu0 0.0
    %415 = vmatprep.subr.mxu0 0.0
    %416 = vmatpush1.msra.mxu0 0.0
    %417 = vmatprep.subr.mxu0 0.0
    %418 = vmatpush1.msra.mxu0 0.0
    %419 = vmatprep.subr.mxu0 0.0
    %420 = vmatpush1.msra.mxu0 0.0
    %421 = vmatprep.subr.mxu0 0.0
    %422 = vmatpush1.msra.mxu0 0.0
    %423 = vmatprep.subr.mxu0 0.0
    %424 = vmatpush1.msra.mxu0 0.0
    %425 = vmatprep.subr.mxu0 0.0
    %426 = vmatpush1.msra.mxu0 0.0
    %427 = vmatprep.subr.mxu0 0.0
    %428 = vmatpush1.msra.mxu0 0.0
    %429 = vmatprep.subr.mxu0 0.0
    %430 = vmatpush1.msra.mxu0 0.0
    %431 = vmatprep.subr.mxu0 0.0
    %432 = vmatpush1.msra.mxu0 0.0
    %433 = vmatprep.subr.mxu0 0.0
    %434 = vmatpush1.msra.mxu0 0.0
    %435 = vmatprep.subr.mxu0 0.0
    %436 = vmatpush1.msra.mxu0 0.0
    %437 = vmatprep.subr.mxu0 0.0
    %438 = vmatpush1.msra.mxu0 0.0
    %439 = vmatprep.subr.mxu0 0.0
    %440 = vmatpush1.msra.mxu0 0.0
    %441 = vmatprep.subr.mxu0 0.0
    %442 = vmatpush1.msra.mxu0 0.0
    %443 = vmatprep.subr.mxu0 0.0
    %444 = vmatpush1.msra.mxu0 0.0
    %445 = vmatprep.subr.mxu0 0.0
    %446 = vmatpush1.msra.mxu0 0.0
    %447 = vmatprep.subr.mxu0 0.0
    %448 = vmatpush1.msra.mxu0 0.0
    %449 = vmatprep.subr.mxu0 0.0
    %450 = vmatpush1.msra.mxu0 0.0
    %451 = vmatprep.subr.mxu0 0.0
    %452 = vmatpush1.msra.mxu0 0.0
    %453 = vmatprep.subr.mxu0 0.0
    %454 = vmatpush1.msra.mxu0 0.0
    %455 = vmatprep.subr.mxu0 0.0
    %456 = vmatpush1.msra.mxu0 0.0
    %457 = vmatprep.subr.mxu0 0.0
    %458 = vmatpush1.msra.mxu0 0.0
    %459 = vmatprep.subr.mxu0 0.0
    %460 = vmatpush1.msra.mxu0 0.0
    %461 = vmatprep.subr.mxu0 0.0
    %462 = vmatpush1.msra.mxu0 0.0
    %463 = vmatprep.mubr.f32.mxu0 0.0
    %464 = vmatmul.mubr.f32.gmra.mrb[0].mxu0 %v170
    %v465 = vpop.f32.mrb[0].mxu0
    %v466 = vadd.f32 %v386, %v465
    %v467 = vpop.f32.mrb[0].mxu0
    %v468 = vadd.f32 %v390, %v467
    %469 = vdwg.mxu0
    %v470 = vsub.f32 %v466, %v245
    %v471 = vmin.f32 %v470, 80.0
    %v472 = vmul.f32 %v471, 1.442695
    %v473 = vpow.pop %v472
    %v474 = vsub.f32 %v468, %v245
    %v475 = vmin.f32 %v474, 80.0
    %v476 = vmul.f32 %v475, 1.442695
    %v477 = vpow.pop %v476
    %v478 = vadd.f32 %v473, %v477
    %v479 = vadd.f32 %v253, %v478
    %v480 = vld [vmem:[#allocation2 + $0x30] sm:$0xff]
    %v481 = vld [vmem:[#allocation2 + $0x38] sm:$0xff]
    %v482 = vld [vmem:[#allocation2 + $0xd0] sm:$0xff]
    %v483 = vld [vmem:[#allocation2 + $0xd8] sm:$0xff]
    %v484 = vld [vmem:[#allocation2 + $0x170] sm:$0xff]
    %v485 = vld [vmem:[#allocation2 + $0x178] sm:$0xff]
    %v486 = vld [vmem:[#allocation2 + $0x210] sm:$0xff]
    %v487 = vld [vmem:[#allocation2 + $0x218] sm:$0xff]
    %v488 = vld [vmem:[#allocation2 + $0x2b0] sm:$0xff]
    %v489 = vld [vmem:[#allocation2 + $0x2b8] sm:$0xff]
    %v490 = vld [vmem:[#allocation2 + $0x350] sm:$0xff]
    %v491 = vld [vmem:[#allocation2 + $0x358] sm:$0xff]
    %v492 = vld [vmem:[#allocation2 + $0x3f0] sm:$0x3]
    %v493 = vld [vmem:[#allocation2 + $0x3f8] sm:$0x3]
    %v494 = vld [vmem:[%s4 + $0x6] sm:$0x3]
    %v496 = vlaneseq
    %v497 = vshrl.u32 %v496, 7
    %v498 = vsub.s32 0, %v497
    %v499 = vrot.slane %v494, %v498
    %v500 = vlaneseq
    %v501 = vshrl.u32 %v500, 7
    %v502 = vsub.s32 1, %v501
    %v503 = vrot.slane %v494, %v502
    %v507 = vsel %vm67, %v492, 0
    %v510 = vsel %vm67, %v493, 0
    %512 = vmatprep.subr.mxu0 %v481
    %513 = vmatpush1.msra.mxu0 %v480
    %514 = vmatprep.subr.mxu0 %v483
    %515 = vmatpush1.msra.mxu0 %v482
    %516 = vmatprep.subr.mxu0 %v485
    %517 = vmatpush1.msra.mxu0 %v484
    %518 = vmatprep.subr.mxu0 %v487
    %519 = vmatpush1.msra.mxu0 %v486
    %520 = vmatprep.subr.mxu0 %v489
    %521 = vmatpush1.msra.mxu0 %v488
    %522 = vmatprep.subr.mxu0 %v491
    %523 = vmatpush1.msra.mxu0 %v490
    %524 = vmatprep.subr.mxu0 %v510
    %525 = vmatpush1.msra.mxu0 %v507
    %526 = vmatprep.subr.mxu0 0.0
    %527 = vmatpush1.msra.mxu0 0.0
    %528 = vmatprep.subr.mxu0 0.0
    %529 = vmatpush1.msra.mxu0 0.0
    %530 = vmatprep.subr.mxu0 0.0
    %531 = vmatpush1.msra.mxu0 0.0
    %532 = vmatprep.subr.mxu0 0.0
    %533 = vmatpush1.msra.mxu0 0.0
    %534 = vmatprep.subr.mxu0 0.0
    %535 = vmatpush1.msra.mxu0 0.0
    %536 = vmatprep.subr.mxu0 0.0
    %537 = vmatpush1.msra.mxu0 0.0
    %538 = vmatprep.subr.mxu0 0.0
    %539 = vmatpush1.msra.mxu0 0.0
    %540 = vmatprep.subr.mxu0 0.0
    %541 = vmatpush1.msra.mxu0 0.0
    %542 = vmatprep.subr.mxu0 0.0
    %543 = vmatpush1.msra.mxu0 0.0
    %544 = vmatprep.subr.mxu0 0.0
    %545 = vmatpush1.msra.mxu0 0.0
    %546 = vmatprep.subr.mxu0 0.0
    %547 = vmatpush1.msra.mxu0 0.0
    %548 = vmatprep.subr.mxu0 0.0
    %549 = vmatpush1.msra.mxu0 0.0
    %550 = vmatprep.subr.mxu0 0.0
    %551 = vmatpush1.msra.mxu0 0.0
    %552 = vmatprep.subr.mxu0 0.0
    %553 = vmatpush1.msra.mxu0 0.0
    %554 = vmatprep.subr.mxu0 0.0
    %555 = vmatpush1.msra.mxu0 0.0
    %556 = vmatprep.subr.mxu0 0.0
    %557 = vmatpush1.msra.mxu0 0.0
    %558 = vmatprep.subr.mxu0 0.0
    %559 = vmatpush1.msra.mxu0 0.0
    %560 = vmatprep.subr.mxu0 0.0
    %561 = vmatpush1.msra.mxu0 0.0
    %562 = vmatprep.subr.mxu0 0.0
    %563 = vmatpush1.msra.mxu0 0.0
    %564 = vmatprep.subr.mxu0 0.0
    %565 = vmatpush1.msra.mxu0 0.0
    %566 = vmatprep.subr.mxu0 0.0
    %567 = vmatpush1.msra.mxu0 0.0
    %568 = vmatprep.subr.mxu0 0.0
    %569 = vmatpush1.msra.mxu0 0.0
    %570 = vmatprep.subr.mxu0 0.0
    %571 = vmatpush1.msra.mxu0 0.0
    %572 = vmatprep.subr.mxu0 0.0
    %573 = vmatpush1.msra.mxu0 0.0
    %574 = vmatprep.subr.mxu0 0.0
    %575 = vmatpush1.msra.mxu0 0.0
    %576 = vmatprep.mubr.f32.mxu0 0.0
    %577 = vmatmul.mubr.f32.gmra.mrb[0].mxu0 %v170
    %v578 = vpop.f32.mrb[0].mxu0
    %v579 = vadd.f32 %v499, %v578
    %v580 = vpop.f32.mrb[0].mxu0
    %v581 = vadd.f32 %v503, %v580
    %582 = vdwg.mxu0
    %v583 = vsub.f32 %v579, %v245
    %v584 = vmin.f32 %v583, 80.0
    %v585 = vmul.f32 %v584, 1.442695
    %v586 = vpow.pop %v585
    %v587 = vsub.f32 %v581, %v245
    %v588 = vmin.f32 %v587, 80.0
    %v589 = vmul.f32 %v588, 1.442695
    %v590 = vpow.pop %v589
    %v591 = vadd.f32 %v586, %v590
    %v592 = vadd.f32 %v366, %v591
    %v593 = vld [vmem:[#allocation2 + $0x40] sm:$0xff]
    %v594 = vld [vmem:[#allocation2 + $0x48] sm:$0xff]
    %v595 = vld [vmem:[#allocation2 + $0xe0] sm:$0xff]
    %v596 = vld [vmem:[#allocation2 + $0xe8] sm:$0xff]
    %v597 = vld [vmem:[#allocation2 + $0x180] sm:$0xff]
    %v598 = vld [vmem:[#allocation2 + $0x188] sm:$0xff]
    %v599 = vld [vmem:[#allocation2 + $0x220] sm:$0xff]
    %v600 = vld [vmem:[#allocation2 + $0x228] sm:$0xff]
    %v601 = vld [vmem:[#allocation2 + $0x2c0] sm:$0xff]
    %v602 = vld [vmem:[#allocation2 + $0x2c8] sm:$0xff]
    %v603 = vld [vmem:[#allocation2 + $0x360] sm:$0xff]
    %v604 = vld [vmem:[#allocation2 + $0x368] sm:$0xff]
    %v605 = vld [vmem:[#allocation2 + $0x400] sm:$0x3]
    %v606 = vld [vmem:[#allocation2 + $0x408] sm:$0x3]
    %v607 = vld [vmem:[%s4 + $0x8] sm:$0x3]
    %v609 = vlaneseq
    %v610 = vshrl.u32 %v609, 7
    %v611 = vsub.s32 0, %v610
    %v612 = vrot.slane %v607, %v611
    %v613 = vlaneseq
    %v614 = vshrl.u32 %v613, 7
    %v615 = vsub.s32 1, %v614
    %v616 = vrot.slane %v607, %v615
    %v620 = vsel %vm67, %v605, 0
    %v623 = vsel %vm67, %v606, 0
    %625 = vmatprep.subr.mxu0 %v594
    %626 = vmatpush1.msra.mxu0 %v593
    %627 = vmatprep.subr.mxu0 %v596
    %628 = vmatpush1.msra.mxu0 %v595
    %629 = vmatprep.subr.mxu0 %v598
    %630 = vmatpush1.msra.mxu0 %v597
    %631 = vmatprep.subr.mxu0 %v600
    %632 = vmatpush1.msra.mxu0 %v599
    %633 = vmatprep.subr.mxu0 %v602
    %634 = vmatpush1.msra.mxu0 %v601
    %635 = vmatprep.subr.mxu0 %v604
    %636 = vmatpush1.msra.mxu0 %v603
    %637 = vmatprep.subr.mxu0 %v623
    %638 = vmatpush1.msra.mxu0 %v620
    %639 = vmatprep.subr.mxu0 0.0
    %640 = vmatpush1.msra.mxu0 0.0
    %641 = vmatprep.subr.mxu0 0.0
    %642 = vmatpush1.msra.mxu0 0.0
    %643 = vmatprep.subr.mxu0 0.0
    %644 = vmatpush1.msra.mxu0 0.0
    %645 = vmatprep.subr.mxu0 0.0
    %646 = vmatpush1.msra.mxu0 0.0
    %647 = vmatprep.subr.mxu0 0.0
    %648 = vmatpush1.msra.mxu0 0.0
    %649 = vmatprep.subr.mxu0 0.0
    %650 = vmatpush1.msra.mxu0 0.0
    %651 = vmatprep.subr.mxu0 0.0
    %652 = vmatpush1.msra.mxu0 0.0
    %653 = vmatprep.subr.mxu0 0.0
    %654 = vmatpush1.msra.mxu0 0.0
    %655 = vmatprep.subr.mxu0 0.0
    %656 = vmatpush1.msra.mxu0 0.0
    %657 = vmatprep.subr.mxu0 0.0
    %658 = vmatpush1.msra.mxu0 0.0
    %659 = vmatprep.subr.mxu0 0.0
    %660 = vmatpush1.msra.mxu0 0.0
    %661 = vmatprep.subr.mxu0 0.0
    %662 = vmatpush1.msra.mxu0 0.0
    %663 = vmatprep.subr.mxu0 0.0
    %664 = vmatpush1.msra.mxu0 0.0
    %665 = vmatprep.subr.mxu0 0.0
    %666 = vmatpush1.msra.mxu0 0.0
    %667 = vmatprep.subr.mxu0 0.0
    %668 = vmatpush1.msra.mxu0 0.0
    %669 = vmatprep.subr.mxu0 0.0
    %670 = vmatpush1.msra.mxu0 0.0
    %671 = vmatprep.subr.mxu0 0.0
    %672 = vmatpush1.msra.mxu0 0.0
    %673 = vmatprep.subr.mxu0 0.0
    %674 = vmatpush1.msra.mxu0 0.0
    %675 = vmatprep.subr.mxu0 0.0
    %676 = vmatpush1.msra.mxu0 0.0
    %677 = vmatprep.subr.mxu0 0.0
    %678 = vmatpush1.msra.mxu0 0.0
    %679 = vmatprep.subr.mxu0 0.0
    %680 = vmatpush1.msra.mxu0 0.0
    %681 = vmatprep.subr.mxu0 0.0
    %682 = vmatpush1.msra.mxu0 0.0
    %683 = vmatprep.subr.mxu0 0.0
    %684 = vmatpush1.msra.mxu0 0.0
    %685 = vmatprep.subr.mxu0 0.0
    %686 = vmatpush1.msra.mxu0 0.0
    %687 = vmatprep.subr.mxu0 0.0
    %688 = vmatpush1.msra.mxu0 0.0
    %689 = vmatprep.mubr.f32.mxu0 0.0
    %690 = vmatmul.mubr.f32.gmra.mrb[0].mxu0 %v170
    %v691 = vpop.f32.mrb[0].mxu0
    %v692 = vadd.f32 %v612, %v691
    %v693 = vpop.f32.mrb[0].mxu0
    %v694 = vadd.f32 %v616, %v693
    %695 = vdwg.mxu0
    %v696 = vsub.f32 %v692, %v245
    %v697 = vmin.f32 %v696, 80.0
    %v698 = vmul.f32 %v697, 1.442695
    %v699 = vpow.pop %v698
    %v700 = vsub.f32 %v694, %v245
    %v701 = vmin.f32 %v700, 80.0
    %v702 = vmul.f32 %v701, 1.442695
    %v703 = vpow.pop %v702
    %v704 = vadd.f32 %v699, %v703
    %v705 = vadd.f32 %v479, %v704
    %v706 = vld [vmem:[#allocation2 + $0x50] sm:$0xff]
    %v707 = vld [vmem:[#allocation2 + $0x58] sm:$0xff]
    %v708 = vld [vmem:[#allocation2 + $0xf0] sm:$0xff]
    %v709 = vld [vmem:[#allocation2 + $0xf8] sm:$0xff]
    %v710 = vld [vmem:[#allocation2 + $0x190] sm:$0xff]
    %v711 = vld [vmem:[#allocation2 + $0x198] sm:$0xff]
    %v712 = vld [vmem:[#allocation2 + $0x230] sm:$0xff]
    %v713 = vld [vmem:[#allocation2 + $0x238] sm:$0xff]
    %v714 = vld [vmem:[#allocation2 + $0x2d0] sm:$0xff]
    %v715 = vld [vmem:[#allocation2 + $0x2d8] sm:$0xff]
    %v716 = vld [vmem:[#allocation2 + $0x370] sm:$0xff]
    %v717 = vld [vmem:[#allocation2 + $0x378] sm:$0xff]
    %v718 = vld [vmem:[#allocation2 + $0x410] sm:$0x3]
    %v719 = vld [vmem:[#allocation2 + $0x418] sm:$0x3]
    %v720 = vld [vmem:[%s4 + $0xa] sm:$0x3]
    %v722 = vlaneseq
    %v723 = vshrl.u32 %v722, 7
    %v724 = vsub.s32 0, %v723
    %v725 = vrot.slane %v720, %v724
    %v726 = vlaneseq
    %v727 = vshrl.u32 %v726, 7
    %v728 = vsub.s32 1, %v727
    %v729 = vrot.slane %v720, %v728
    %v733 = vsel %vm67, %v718, 0
    %v736 = vsel %vm67, %v719, 0
    %738 = vmatprep.subr.mxu0 %v707
    %739 = vmatpush1.msra.mxu0 %v706
    %740 = vmatprep.subr.mxu0 %v709
    %741 = vmatpush1.msra.mxu0 %v708
    %742 = vmatprep.subr.mxu0 %v711
    %743 = vmatpush1.msra.mxu0 %v710
    %744 = vmatprep.subr.mxu0 %v713
    %745 = vmatpush1.msra.mxu0 %v712
    %746 = vmatprep.subr.mxu0 %v715
    %747 = vmatpush1.msra.mxu0 %v714
    %748 = vmatprep.subr.mxu0 %v717
    %749 = vmatpush1.msra.mxu0 %v716
    %750 = vmatprep.subr.mxu0 %v736
    %751 = vmatpush1.msra.mxu0 %v733
    %752 = vmatprep.subr.mxu0 0.0
    %753 = vmatpush1.msra.mxu0 0.0
    %754 = vmatprep.subr.mxu0 0.0
    %755 = vmatpush1.msra.mxu0 0.0
    %756 = vmatprep.subr.mxu0 0.0
    %757 = vmatpush1.msra.mxu0 0.0
    %758 = vmatprep.subr.mxu0 0.0
    %759 = vmatpush1.msra.mxu0 0.0
    %760 = vmatprep.subr.mxu0 0.0
    %761 = vmatpush1.msra.mxu0 0.0
    %762 = vmatprep.subr.mxu0 0.0
    %763 = vmatpush1.msra.mxu0 0.0
    %764 = vmatprep.subr.mxu0 0.0
    %765 = vmatpush1.msra.mxu0 0.0
    %766 = vmatprep.subr.mxu0 0.0
    %767 = vmatpush1.msra.mxu0 0.0
    %768 = vmatprep.subr.mxu0 0.0
    %769 = vmatpush1.msra.mxu0 0.0
    %770 = vmatprep.subr.mxu0 0.0
    %771 = vmatpush1.msra.mxu0 0.0
    %772 = vmatprep.subr.mxu0 0.0
    %773 = vmatpush1.msra.mxu0 0.0
    %774 = vmatprep.subr.mxu0 0.0
    %775 = vmatpush1.msra.mxu0 0.0
    %776 = vmatprep.subr.mxu0 0.0
    %777 = vmatpush1.msra.mxu0 0.0
    %778 = vmatprep.subr.mxu0 0.0
    %779 = vmatpush1.msra.mxu0 0.0
    %780 = vmatprep.subr.mxu0 0.0
    %781 = vmatpush1.msra.mxu0 0.0
    %782 = vmatprep.subr.mxu0 0.0
    %783 = vmatpush1.msra.mxu0 0.0
    %784 = vmatprep.subr.mxu0 0.0
    %785 = vmatpush1.msra.mxu0 0.0
    %786 = vmatprep.subr.mxu0 0.0
    %787 = vmatpush1.msra.mxu0 0.0
    %788 = vmatprep.subr.mxu0 0.0
    %789 = vmatpush1.msra.mxu0 0.0
    %790 = vmatprep.subr.mxu0 0.0
    %791 = vmatpush1.msra.mxu0 0.0
    %792 = vmatprep.subr.mxu0 0.0
    %793 = vmatpush1.msra.mxu0 0.0
    %794 = vmatprep.subr.mxu0 0.0
    %795 = vmatpush1.msra.mxu0 0.0
    %796 = vmatprep.subr.mxu0 0.0
    %797 = vmatpush1.msra.mxu0 0.0
    %798 = vmatprep.subr.mxu0 0.0
    %799 = vmatpush1.msra.mxu0 0.0
    %800 = vmatprep.subr.mxu0 0.0
    %801 = vmatpush1.msra.mxu0 0.0
    %802 = vmatprep.mubr.f32.mxu0 0.0
    %803 = vmatmul.mubr.f32.gmra.mrb[0].mxu0 %v170
    %v804 = vpop.f32.mrb[0].mxu0
    %v805 = vadd.f32 %v725, %v804
    %v806 = vpop.f32.mrb[0].mxu0
    %v807 = vadd.f32 %v729, %v806
    %808 = vdwg.mxu0
    %v809 = vsub.f32 %v805, %v245
    %v810 = vmin.f32 %v809, 80.0
    %v811 = vmul.f32 %v810, 1.442695
    %v812 = vpow.pop %v811
    %v813 = vsub.f32 %v807, %v245
    %v814 = vmin.f32 %v813, 80.0
    %v815 = vmul.f32 %v814, 1.442695
    %v816 = vpow.pop %v815
    %v817 = vadd.f32 %v812, %v816
    %v818 = vadd.f32 %v592, %v817
    %v819 = vld [vmem:[#allocation2 + $0x60] sm:$0xff]
    %v820 = vld [vmem:[#allocation2 + $0x68] sm:$0xff]
    %v821 = vld [vmem:[#allocation2 + $0x100] sm:$0xff]
    %v822 = vld [vmem:[#allocation2 + $0x108] sm:$0xff]
    %v823 = vld [vmem:[#allocation2 + $0x1a0] sm:$0xff]
    %v824 = vld [vmem:[#allocation2 + $0x1a8] sm:$0xff]
    %v825 = vld [vmem:[#allocation2 + $0x240] sm:$0xff]
    %v826 = vld [vmem:[#allocation2 + $0x248] sm:$0xff]
    %v827 = vld [vmem:[#allocation2 + $0x2e0] sm:$0xff]
    %v828 = vld [vmem:[#allocation2 + $0x2e8] sm:$0xff]
    %v829 = vld [vmem:[#allocation2 + $0x380] sm:$0xff]
    %v830 = vld [vmem:[#allocation2 + $0x388] sm:$0xff]
    %v831 = vld [vmem:[#allocation2 + $0x420] sm:$0x3]
    %v832 = vld [vmem:[#allocation2 + $0x428] sm:$0x3]
    %v833 = vld [vmem:[%s4 + $0xc] sm:$0x3]
    %v835 = vlaneseq
    %v836 = vshrl.u32 %v835, 7
    %v837 = vsub.s32 0, %v836
    %v838 = vrot.slane %v833, %v837
    %v839 = vlaneseq
    %v840 = vshrl.u32 %v839, 7
    %v841 = vsub.s32 1, %v840
    %v842 = vrot.slane %v833, %v841
    %v846 = vsel %vm67, %v831, 0
    %v849 = vsel %vm67, %v832, 0
    %851 = vmatprep.subr.mxu0 %v820
    %852 = vmatpush1.msra.mxu0 %v819
    %853 = vmatprep.subr.mxu0 %v822
    %854 = vmatpush1.msra.mxu0 %v821
    %855 = vmatprep.subr.mxu0 %v824
    %856 = vmatpush1.msra.mxu0 %v823
    %857 = vmatprep.subr.mxu0 %v826
    %858 = vmatpush1.msra.mxu0 %v825
    %859 = vmatprep.subr.mxu0 %v828
    %860 = vmatpush1.msra.mxu0 %v827
    %861 = vmatprep.subr.mxu0 %v830
    %862 = vmatpush1.msra.mxu0 %v829
    %863 = vmatprep.subr.mxu0 %v849
    %864 = vmatpush1.msra.mxu0 %v846
    %865 = vmatprep.subr.mxu0 0.0
    %866 = vmatpush1.msra.mxu0 0.0
    %867 = vmatprep.subr.mxu0 0.0
    %868 = vmatpush1.msra.mxu0 0.0
    %869 = vmatprep.subr.mxu0 0.0
    %870 = vmatpush1.msra.mxu0 0.0
    %871 = vmatprep.subr.mxu0 0.0
    %872 = vmatpush1.msra.mxu0 0.0
    %873 = vmatprep.subr.mxu0 0.0
    %874 = vmatpush1.msra.mxu0 0.0
    %875 = vmatprep.subr.mxu0 0.0
    %876 = vmatpush1.msra.mxu0 0.0
    %877 = vmatprep.subr.mxu0 0.0
    %878 = vmatpush1.msra.mxu0 0.0
    %879 = vmatprep.subr.mxu0 0.0
    %880 = vmatpush1.msra.mxu0 0.0
    %881 = vmatprep.subr.mxu0 0.0
    %882 = vmatpush1.msra.mxu0 0.0
    %883 = vmatprep.subr.mxu0 0.0
    %884 = vmatpush1.msra.mxu0 0.0
    %885 = vmatprep.subr.mxu0 0.0
    %886 = vmatpush1.msra.mxu0 0.0
    %887 = vmatprep.subr.mxu0 0.0
    %888 = vmatpush1.msra.mxu0 0.0
    %889 = vmatprep.subr.mxu0 0.0
    %890 = vmatpush1.msra.mxu0 0.0
    %891 = vmatprep.subr.mxu0 0.0
    %892 = vmatpush1.msra.mxu0 0.0
    %893 = vmatprep.subr.mxu0 0.0
    %894 = vmatpush1.msra.mxu0 0.0
    %895 = vmatprep.subr.mxu0 0.0
    %896 = vmatpush1.msra.mxu0 0.0
    %897 = vmatprep.subr.mxu0 0.0
    %898 = vmatpush1.msra.mxu0 0.0
    %899 = vmatprep.subr.mxu0 0.0
    %900 = vmatpush1.msra.mxu0 0.0
    %901 = vmatprep.subr.mxu0 0.0
    %902 = vmatpush1.msra.mxu0 0.0
    %903 = vmatprep.subr.mxu0 0.0
    %904 = vmatpush1.msra.mxu0 0.0
    %905 = vmatprep.subr.mxu0 0.0
    %906 = vmatpush1.msra.mxu0 0.0
    %907 = vmatprep.subr.mxu0 0.0
    %908 = vmatpush1.msra.mxu0 0.0
    %909 = vmatprep.subr.mxu0 0.0
    %910 = vmatpush1.msra.mxu0 0.0
    %911 = vmatprep.subr.mxu0 0.0
    %912 = vmatpush1.msra.mxu0 0.0
    %913 = vmatprep.subr.mxu0 0.0
    %914 = vmatpush1.msra.mxu0 0.0
    %915 = vmatprep.mubr.f32.mxu0 0.0
    %916 = vmatmul.mubr.f32.gmra.mrb[0].mxu0 %v170
    %v917 = vpop.f32.mrb[0].mxu0
    %v918 = vadd.f32 %v838, %v917
    %v919 = vpop.f32.mrb[0].mxu0
    %v920 = vadd.f32 %v842, %v919
    %921 = vdwg.mxu0
    %v922 = vsub.f32 %v918, %v245
    %v923 = vmin.f32 %v922, 80.0
    %v924 = vmul.f32 %v923, 1.442695
    %v925 = vpow.pop %v924
    %v926 = vsub.f32 %v920, %v245
    %v927 = vmin.f32 %v926, 80.0
    %v928 = vmul.f32 %v927, 1.442695
    %v929 = vpow.pop %v928
    %v930 = vadd.f32 %v925, %v929
    %v931 = vadd.f32 %v705, %v930
    %v932 = vld [vmem:[#allocation2 + $0x70] sm:$0xff]
    %v933 = vld [vmem:[#allocation2 + $0x78] sm:$0xff]
    %v934 = vld [vmem:[#allocation2 + $0x110] sm:$0xff]
    %v935 = vld [vmem:[#allocation2 + $0x118] sm:$0xff]
    %v936 = vld [vmem:[#allocation2 + $0x1b0] sm:$0xff]
    %v937 = vld [vmem:[#allocation2 + $0x1b8] sm:$0xff]
    %v938 = vld [vmem:[#allocation2 + $0x250] sm:$0xff]
    %v939 = vld [vmem:[#allocation2 + $0x258] sm:$0xff]
    %v940 = vld [vmem:[#allocation2 + $0x2f0] sm:$0xff]
    %v941 = vld [vmem:[#allocation2 + $0x2f8] sm:$0xff]
    %v942 = vld [vmem:[#allocation2 + $0x390] sm:$0xff]
    %v943 = vld [vmem:[#allocation2 + $0x398] sm:$0xff]
    %v944 = vld [vmem:[#allocation2 + $0x430] sm:$0x3]
    %v945 = vld [vmem:[#allocation2 + $0x438] sm:$0x3]
    %v946 = vld [vmem:[%s4 + $0xe] sm:$0x3]
    %v948 = vlaneseq
    %v949 = vshrl.u32 %v948, 7
    %v950 = vsub.s32 0, %v949
    %v951 = vrot.slane %v946, %v950
    %v952 = vlaneseq
    %v953 = vshrl.u32 %v952, 7
    %v954 = vsub.s32 1, %v953
    %v955 = vrot.slane %v946, %v954
    %v959 = vsel %vm67, %v944, 0
    %v962 = vsel %vm67, %v945, 0
    %964 = vmatprep.subr.mxu0 %v933
    %965 = vmatpush1.msra.mxu0 %v932
    %966 = vmatprep.subr.mxu0 %v935
    %967 = vmatpush1.msra.mxu0 %v934
    %968 = vmatprep.subr.mxu0 %v937
    %969 = vmatpush1.msra.mxu0 %v936
    %970 = vmatprep.subr.mxu0 %v939
    %971 = vmatpush1.msra.mxu0 %v938
    %972 = vmatprep.subr.mxu0 %v941
    %973 = vmatpush1.msra.mxu0 %v940
    %974 = vmatprep.subr.mxu0 %v943
    %975 = vmatpush1.msra.mxu0 %v942
    %976 = vmatprep.subr.mxu0 %v962
    %977 = vmatpush1.msra.mxu0 %v959
    %978 = vmatprep.subr.mxu0 0.0
    %979 = vmatpush1.msra.mxu0 0.0
    %980 = vmatprep.subr.mxu0 0.0
    %981 = vmatpush1.msra.mxu0 0.0
    %982 = vmatprep.subr.mxu0 0.0
    %983 = vmatpush1.msra.mxu0 0.0
    %984 = vmatprep.subr.mxu0 0.0
    %985 = vmatpush1.msra.mxu0 0.0
    %986 = vmatprep.subr.mxu0 0.0
    %987 = vmatpush1.msra.mxu0 0.0
    %988 = vmatprep.subr.mxu0 0.0
    %989 = vmatpush1.msra.mxu0 0.0
    %990 = vmatprep.subr.mxu0 0.0
    %991 = vmatpush1.msra.mxu0 0.0
    %992 = vmatprep.subr.mxu0 0.0
    %993 = vmatpush1.msra.mxu0 0.0
    %994 = vmatprep.subr.mxu0 0.0
    %995 = vmatpush1.msra.mxu0 0.0
    %996 = vmatprep.subr.mxu0 0.0
    %997 = vmatpush1.msra.mxu0 0.0
    %998 = vmatprep.subr.mxu0 0.0
    %999 = vmatpush1.msra.mxu0 0.0
    %1000 = vmatprep.subr.mxu0 0.0
    %1001 = vmatpush1.msra.mxu0 0.0
    %1002 = vmatprep.subr.mxu0 0.0
    %1003 = vmatpush1.msra.mxu0 0.0
    %1004 = vmatprep.subr.mxu0 0.0
    %1005 = vmatpush1.msra.mxu0 0.0
    %1006 = vmatprep.subr.mxu0 0.0
    %1007 = vmatpush1.msra.mxu0 0.0
    %1008 = vmatprep.subr.mxu0 0.0
    %1009 = vmatpush1.msra.mxu0 0.0
    %1010 = vmatprep.subr.mxu0 0.0
    %1011 = vmatpush1.msra.mxu0 0.0
    %1012 = vmatprep.subr.mxu0 0.0
    %1013 = vmatpush1.msra.mxu0 0.0
    %1014 = vmatprep.subr.mxu0 0.0
    %1015 = vmatpush1.msra.mxu0 0.0
    %1016 = vmatprep.subr.mxu0 0.0
    %1017 = vmatpush1.msra.mxu0 0.0
    %1018 = vmatprep.subr.mxu0 0.0
    %1019 = vmatpush1.msra.mxu0 0.0
    %1020 = vmatprep.subr.mxu0 0.0
    %1021 = vmatpush1.msra.mxu0 0.0
    %1022 = vmatprep.subr.mxu0 0.0
    %1023 = vmatpush1.msra.mxu0 0.0
    %1024 = vmatprep.subr.mxu0 0.0
    %1025 = vmatpush1.msra.mxu0 0.0
    %1026 = vmatprep.subr.mxu0 0.0
    %1027 = vmatpush1.msra.mxu0 0.0
    %1028 = vmatprep.mubr.f32.mxu0 0.0
    %1029 = vmatmul.mubr.f32.gmra.mrb[0].mxu0 %v170
    %v1030 = vpop.f32.mrb[0].mxu0
    %v1031 = vadd.f32 %v951, %v1030
    %v1032 = vpop.f32.mrb[0].mxu0
    %v1033 = vadd.f32 %v955, %v1032
    %1034 = vdwg.mxu0
    %v1035 = vsub.f32 %v1031, %v245
    %v1036 = vmin.f32 %v1035, 80.0
    %v1037 = vmul.f32 %v1036, 1.442695
    %v1038 = vpow.pop %v1037
    %v1039 = vsub.f32 %v1033, %v245
    %v1040 = vmin.f32 %v1039, 80.0
    %v1041 = vmul.f32 %v1040, 1.442695
    %v1042 = vpow.pop %v1041
    %v1043 = vadd.f32 %v1038, %v1042
    %v1044 = vadd.f32 %v818, %v1043
    %v1045 = vld [vmem:[#allocation2 + $0x80] sm:$0xff]
    %v1046 = vld [vmem:[#allocation2 + $0x88] sm:$0xff]
    %v1047 = vld [vmem:[#allocation2 + $0x120] sm:$0xff]
    %v1048 = vld [vmem:[#allocation2 + $0x128] sm:$0xff]
    %v1049 = vld [vmem:[#allocation2 + $0x1c0] sm:$0xff]
    %v1050 = vld [vmem:[#allocation2 + $0x1c8] sm:$0xff]
    %v1051 = vld [vmem:[#allocation2 + $0x260] sm:$0xff]
    %v1052 = vld [vmem:[#allocation2 + $0x268] sm:$0xff]
    %v1053 = vld [vmem:[#allocation2 + $0x300] sm:$0xff]
    %v1054 = vld [vmem:[#allocation2 + $0x308] sm:$0xff]
    %v1055 = vld [vmem:[#allocation2 + $0x3a0] sm:$0xff]
    %v1056 = vld [vmem:[#allocation2 + $0x3a8] sm:$0xff]
    %v1057 = vld [vmem:[#allocation2 + $0x440] sm:$0x3]
    %v1058 = vld [vmem:[#allocation2 + $0x448] sm:$0x3]
    %v1059 = vld [vmem:[%s4 + $0x10] sm:$0x3]
    %v1061 = vlaneseq
    %v1062 = vshrl.u32 %v1061, 7
    %v1063 = vsub.s32 0, %v1062
    %v1064 = vrot.slane %v1059, %v1063
    %v1065 = vlaneseq
    %v1066 = vshrl.u32 %v1065, 7
    %v1067 = vsub.s32 1, %v1066
    %v1068 = vrot.slane %v1059, %v1067
    %v1072 = vsel %vm67, %v1057, 0
    %v1075 = vsel %vm67, %v1058, 0
    %1077 = vmatprep.subr.mxu0 %v1046
    %1078 = vmatpush1.msra.mxu0 %v1045
    %1079 = vmatprep.subr.mxu0 %v1048
    %1080 = vmatpush1.msra.mxu0 %v1047
    %1081 = vmatprep.subr.mxu0 %v1050
    %1082 = vmatpush1.msra.mxu0 %v1049
    %1083 = vmatprep.subr.mxu0 %v1052
    %1084 = vmatpush1.msra.mxu0 %v1051
    %1085 = vmatprep.subr.mxu0 %v1054
    %1086 = vmatpush1.msra.mxu0 %v1053
    %1087 = vmatprep.subr.mxu0 %v1056
    %1088 = vmatpush1.msra.mxu0 %v1055
    %1089 = vmatprep.subr.mxu0 %v1075
    %1090 = vmatpush1.msra.mxu0 %v1072
    %1091 = vmatprep.subr.mxu0 0.0
    %1092 = vmatpush1.msra.mxu0 0.0
    %1093 = vmatprep.subr.mxu0 0.0
    %1094 = vmatpush1.msra.mxu0 0.0
    %1095 = vmatprep.subr.mxu0 0.0
    %1096 = vmatpush1.msra.mxu0 0.0
    %1097 = vmatprep.subr.mxu0 0.0
    %1098 = vmatpush1.msra.mxu0 0.0
    %1099 = vmatprep.subr.mxu0 0.0
    %1100 = vmatpush1.msra.mxu0 0.0
    %1101 = vmatprep.subr.mxu0 0.0
    %1102 = vmatpush1.msra.mxu0 0.0
    %1103 = vmatprep.subr.mxu0 0.0
    %1104 = vmatpush1.msra.mxu0 0.0
    %1105 = vmatprep.subr.mxu0 0.0
    %1106 = vmatpush1.msra.mxu0 0.0
    %1107 = vmatprep.subr.mxu0 0.0
    %1108 = vmatpush1.msra.mxu0 0.0
    %1109 = vmatprep.subr.mxu0 0.0
    %1110 = vmatpush1.msra.mxu0 0.0
    %1111 = vmatprep.subr.mxu0 0.0
    %1112 = vmatpush1.msra.mxu0 0.0
    %1113 = vmatprep.subr.mxu0 0.0
    %1114 = vmatpush1.msra.mxu0 0.0
    %1115 = vmatprep.subr.mxu0 0.0
    %1116 = vmatpush1.msra.mxu0 0.0
    %1117 = vmatprep.subr.mxu0 0.0
    %1118 = vmatpush1.msra.mxu0 0.0
    %1119 = vmatprep.subr.mxu0 0.0
    %1120 = vmatpush1.msra.mxu0 0.0
    %1121 = vmatprep.subr.mxu0 0.0
    %1122 = vmatpush1.msra.mxu0 0.0
    %1123 = vmatprep.subr.mxu0 0.0
    %1124 = vmatpush1.msra.mxu0 0.0
    %1125 = vmatprep.subr.mxu0 0.0
    %1126 = vmatpush1.msra.mxu0 0.0
    %1127 = vmatprep.subr.mxu0 0.0
    %1128 = vmatpush1.msra.mxu0 0.0
    %1129 = vmatprep.subr.mxu0 0.0
    %1130 = vmatpush1.msra.mxu0 0.0
    %1131 = vmatprep.subr.mxu0 0.0
    %1132 = vmatpush1.msra.mxu0 0.0
    %1133 = vmatprep.subr.mxu0 0.0
    %1134 = vmatpush1.msra.mxu0 0.0
    %1135 = vmatprep.subr.mxu0 0.0
    %1136 = vmatpush1.msra.mxu0 0.0
    %1137 = vmatprep.subr.mxu0 0.0
    %1138 = vmatpush1.msra.mxu0 0.0
    %1139 = vmatprep.subr.mxu0 0.0
    %1140 = vmatpush1.msra.mxu0 0.0
    %1141 = vmatprep.mubr.f32.mxu0 0.0
    %1142 = vmatmul.mubr.f32.gmra.mrb[0].mxu0 %v170
    %v1143 = vpop.f32.mrb[0].mxu0
    %v1144 = vadd.f32 %v1064, %v1143
    %v1145 = vpop.f32.mrb[0].mxu0
    %v1146 = vadd.f32 %v1068, %v1145
    %1147 = vdwg.mxu0
    %v1148 = vsub.f32 %v1144, %v245
    %v1149 = vmin.f32 %v1148, 80.0
    %v1150 = vmul.f32 %v1149, 1.442695
    %v1151 = vpow.pop %v1150
    %v1152 = vsub.f32 %v1146, %v245
    %v1153 = vmin.f32 %v1152, 80.0
    %v1154 = vmul.f32 %v1153, 1.442695
    %v1155 = vpow.pop %v1154
    %v1156 = vadd.f32 %v1151, %v1155
    %v1157 = vadd.f32 %v931, %v1156
    %v1158 = vld [vmem:[#allocation2 + $0x90] sm:$0xff]
    %v1159 = vld [vmem:[#allocation2 + $0x98] sm:$0xff]
    %v1160 = vld [vmem:[#allocation2 + $0x130] sm:$0xff]
    %v1161 = vld [vmem:[#allocation2 + $0x138] sm:$0xff]
    %v1162 = vld [vmem:[#allocation2 + $0x1d0] sm:$0xff]
    %v1163 = vld [vmem:[#allocation2 + $0x1d8] sm:$0xff]
    %v1164 = vld [vmem:[#allocation2 + $0x270] sm:$0xff]
    %v1165 = vld [vmem:[#allocation2 + $0x278] sm:$0xff]
    %v1166 = vld [vmem:[#allocation2 + $0x310] sm:$0xff]
    %v1167 = vld [vmem:[#allocation2 + $0x318] sm:$0xff]
    %v1168 = vld [vmem:[#allocation2 + $0x3b0] sm:$0xff]
    %v1169 = vld [vmem:[#allocation2 + $0x3b8] sm:$0xff]
    %v1170 = vld [vmem:[#allocation2 + $0x450] sm:$0x3]
    %v1171 = vld [vmem:[#allocation2 + $0x458] sm:$0x3]
    %v1172 = vld [vmem:[%s4 + $0x12] sm:$0x3]
    %v1174 = vlaneseq
    %v1175 = vshrl.u32 %v1174, 7
    %v1176 = vsub.s32 0, %v1175
    %v1177 = vrot.slane %v1172, %v1176
    %v1178 = vlaneseq
    %v1179 = vshrl.u32 %v1178, 7
    %v1180 = vsub.s32 1, %v1179
    %v1181 = vrot.slane %v1172, %v1180
    %v1185 = vsel %vm67, %v1170, 0
    %v1188 = vsel %vm67, %v1171, 0
    %1190 = vmatprep.subr.mxu0 %v1159
    %1191 = vmatpush1.msra.mxu0 %v1158
    %1192 = vmatprep.subr.mxu0 %v1161
    %1193 = vmatpush1.msra.mxu0 %v1160
    %1194 = vmatprep.subr.mxu0 %v1163
    %1195 = vmatpush1.msra.mxu0 %v1162
    %1196 = vmatprep.subr.mxu0 %v1165
    %1197 = vmatpush1.msra.mxu0 %v1164
    %1198 = vmatprep.subr.mxu0 %v1167
    %1199 = vmatpush1.msra.mxu0 %v1166
    %1200 = vmatprep.subr.mxu0 %v1169
    %1201 = vmatpush1.msra.mxu0 %v1168
    %1202 = vmatprep.subr.mxu0 %v1188
    %1203 = vmatpush1.msra.mxu0 %v1185
    %1204 = vmatprep.subr.mxu0 0.0
    %1205 = vmatpush1.msra.mxu0 0.0
    %1206 = vmatprep.subr.mxu0 0.0
    %1207 = vmatpush1.msra.mxu0 0.0
    %1208 = vmatprep.subr.mxu0 0.0
    %1209 = vmatpush1.msra.mxu0 0.0
    %1210 = vmatprep.subr.mxu0 0.0
    %1211 = vmatpush1.msra.mxu0 0.0
    %1212 = vmatprep.subr.mxu0 0.0
    %1213 = vmatpush1.msra.mxu0 0.0
    %1214 = vmatprep.subr.mxu0 0.0
    %1215 = vmatpush1.msra.mxu0 0.0
    %1216 = vmatprep.subr.mxu0 0.0
    %1217 = vmatpush1.msra.mxu0 0.0
    %1218 = vmatprep.subr.mxu0 0.0
    %1219 = vmatpush1.msra.mxu0 0.0
    %1220 = vmatprep.subr.mxu0 0.0
    %1221 = vmatpush1.msra.mxu0 0.0
    %1222 = vmatprep.subr.mxu0 0.0
    %1223 = vmatpush1.msra.mxu0 0.0
    %1224 = vmatprep.subr.mxu0 0.0
    %1225 = vmatpush1.msra.mxu0 0.0
    %1226 = vmatprep.subr.mxu0 0.0
    %1227 = vmatpush1.msra.mxu0 0.0
    %1228 = vmatprep.subr.mxu0 0.0
    %1229 = vmatpush1.msra.mxu0 0.0
    %1230 = vmatprep.subr.mxu0 0.0
    %1231 = vmatpush1.msra.mxu0 0.0
    %1232 = vmatprep.subr.mxu0 0.0
    %1233 = vmatpush1.msra.mxu0 0.0
    %1234 = vmatprep.subr.mxu0 0.0
    %1235 = vmatpush1.msra.mxu0 0.0
    %1236 = vmatprep.subr.mxu0 0.0
    %1237 = vmatpush1.msra.mxu0 0.0
    %1238 = vmatprep.subr.mxu0 0.0
    %1239 = vmatpush1.msra.mxu0 0.0
    %1240 = vmatprep.subr.mxu0 0.0
    %1241 = vmatpush1.msra.mxu0 0.0
    %1242 = vmatprep.subr.mxu0 0.0
    %1243 = vmatpush1.msra.mxu0 0.0
    %1244 = vmatprep.subr.mxu0 0.0
    %1245 = vmatpush1.msra.mxu0 0.0
    %1246 = vmatprep.subr.mxu0 0.0
    %1247 = vmatpush1.msra.mxu0 0.0
    %1248 = vmatprep.subr.mxu0 0.0
    %1249 = vmatpush1.msra.mxu0 0.0
    %1250 = vmatprep.subr.mxu0 0.0
    %1251 = vmatpush1.msra.mxu0 0.0
    %1252 = vmatprep.subr.mxu0 0.0
    %1253 = vmatpush1.msra.mxu0 0.0
    %1254 = vmatprep.mubr.f32.mxu0 0.0
    %1255 = vmatmul.mubr.f32.gmra.mrb[0].mxu0 %v170
    %v1256 = vpop.f32.mrb[0].mxu0
    %v1257 = vadd.f32 %v1177, %v1256
    %v1258 = vpop.f32.mrb[0].mxu0
    %v1259 = vadd.f32 %v1181, %v1258
    %1260 = vdwg.mxu0
    %v1261 = vsub.f32 %v1257, %v245
    %v1262 = vmin.f32 %v1261, 80.0
    %v1263 = vmul.f32 %v1262, 1.442695
    %v1264 = vpow.pop %v1263
    %v1265 = vsub.f32 %v1259, %v245
    %v1266 = vmin.f32 %v1265, 80.0
    %v1267 = vmul.f32 %v1266, 1.442695
    %v1268 = vpow.pop %v1267
    %v1269 = vadd.f32 %v1264, %v1268
    %v1270 = vadd.f32 %v1044, %v1269
    %v1271 = vadd.f32 %v1157, %v1270
    %v1272 = vrcp.pop %v1271
    %v1273 = vmul.f32 %v46, %v1272
    %v1274 = vld [vmem:[%s5] sm:$0xff]
    %v1275 = vld [vmem:[%s5 + $0x8] sm:$0xff]
    %v1276 = vld [vmem:[%s5 + $0x10] sm:$0xff]
    %v1277 = vld [vmem:[%s5 + $0x18] sm:$0xff]
    %v1278 = vld [vmem:[%s5 + $0x20] sm:$0xff]
    %v1279 = vld [vmem:[%s5 + $0x28] sm:$0xff]
    %v1280 = vld [vmem:[%s5 + $0x30] sm:$0xff]
    %v1281 = vld [vmem:[%s5 + $0x38] sm:$0xff]
    %v1282 = vld [vmem:[%s5 + $0x40] sm:$0x3]
    %v1283 = vld [vmem:[%s6] sm:$0x1]
    %v1285 = vlaneseq
    %v1286 = vshrl.u32 %v1285, 7
    %v1287 = vsub.s32 0, %v1286
    %v1288 = vrot.slane %v1283, %v1287
    %v1291 = vsel %vm63, %v1273, 0
    %v1294 = vsel %vm67, %v1282, 0
    %1296 = vmatprep.subr.mxu0 0.0
    %1297 = vmatpush1.msra.mxu0 %v1274
    %1298 = vmatprep.subr.mxu0 0.0
    %1299 = vmatpush1.msra.mxu0 %v1275
    %1300 = vmatprep.subr.mxu0 0.0
    %1301 = vmatpush1.msra.mxu0 %v1276
    %1302 = vmatprep.subr.mxu0 0.0
    %1303 = vmatpush1.msra.mxu0 %v1277
    %1304 = vmatprep.subr.mxu0 0.0
    %1305 = vmatpush1.msra.mxu0 %v1278
    %1306 = vmatprep.subr.mxu0 0.0
    %1307 = vmatpush1.msra.mxu0 %v1279
    %1308 = vmatprep.subr.mxu0 0.0
    %1309 = vmatpush1.msra.mxu0 %v1280
    %1310 = vmatprep.subr.mxu0 0.0
    %1311 = vmatpush1.msra.mxu0 %v1281
    %1312 = vmatprep.subr.mxu0 0.0
    %1313 = vmatpush1.msra.mxu0 %v1294
    %1314 = vmatprep.subr.mxu0 0.0
    %1315 = vmatpush1.msra.mxu0 0.0
    %1316 = vmatprep.subr.mxu0 0.0
    %1317 = vmatpush1.msra.mxu0 0.0
    %1318 = vmatprep.subr.mxu0 0.0
    %1319 = vmatpush1.msra.mxu0 0.0
    %1320 = vmatprep.subr.mxu0 0.0
    %1321 = vmatpush1.msra.mxu0 0.0
    %1322 = vmatprep.subr.mxu0 0.0
    %1323 = vmatpush1.msra.mxu0 0.0
    %1324 = vmatprep.subr.mxu0 0.0
    %1325 = vmatpush1.msra.mxu0 0.0
    %1326 = vmatprep.subr.mxu0 0.0
    %1327 = vmatpush1.msra.mxu0 0.0
    %1328 = vmatprep.subr.mxu0 0.0
    %1329 = vmatpush1.msra.mxu0 0.0
    %1330 = vmatprep.subr.mxu0 0.0
    %1331 = vmatpush1.msra.mxu0 0.0
    %1332 = vmatprep.subr.mxu0 0.0
    %1333 = vmatpush1.msra.mxu0 0.0
    %1334 = vmatprep.subr.mxu0 0.0
    %1335 = vmatpush1.msra.mxu0 0.0
    %1336 = vmatprep.subr.mxu0 0.0
    %1337 = vmatpush1.msra.mxu0 0.0
    %1338 = vmatprep.subr.mxu0 0.0
    %1339 = vmatpush1.msra.mxu0 0.0
    %1340 = vmatprep.subr.mxu0 0.0
    %1341 = vmatpush1.msra.mxu0 0.0
    %1342 = vmatprep.subr.mxu0 0.0
    %1343 = vmatpush1.msra.mxu0 0.0
    %1344 = vmatprep.subr.mxu0 0.0
    %1345 = vmatpush1.msra.mxu0 0.0
    %1346 = vmatprep.subr.mxu0 0.0
    %1347 = vmatpush1.msra.mxu0 0.0
    %1348 = vmatprep.subr.mxu0 0.0
    %1349 = vmatpush1.msra.mxu0 0.0
    %1350 = vmatprep.subr.mxu0 0.0
    %1351 = vmatpush1.msra.mxu0 0.0
    %1352 = vmatprep.subr.mxu0 0.0
    %1353 = vmatpush1.msra.mxu0 0.0
    %1354 = vmatprep.subr.mxu0 0.0
    %1355 = vmatpush1.msra.mxu0 0.0
    %1356 = vmatprep.subr.mxu0 0.0
    %1357 = vmatpush1.msra.mxu0 0.0
    %1358 = vmatprep.subr.mxu0 0.0
    %1359 = vmatpush1.msra.mxu0 0.0
    %1360 = vmatprep.mubr.f32.mxu0 0.0
    %1361 = vmatmul.mubr.f32.gmra.mrb[0].mxu0 %v1291
    %v1362 = vpop.f32.mrb[0].mxu0
    %v1363 = vadd.f32 %v1288, %v1362
    %v1364 = vpop.f32.mrb[0].mxu0
    %1365 = vdwg.mxu0
    %v1366 = vmax.f32 %v1363, 0.0
    %v1367 = vld [vmem:[%s7] sm:$0xff]
    %v1368 = vld [vmem:[%s7 + $0x8] sm:$0xff]
    %v1369 = vld [vmem:[%s7 + $0x10] sm:$0xff]
    %v1370 = vld [vmem:[%s7 + $0x18] sm:$0xff]
    %v1371 = vld [vmem:[%s7 + $0x20] sm:$0xff]
    %v1372 = vld [vmem:[%s7 + $0x28] sm:$0xff]
    %v1373 = vld [vmem:[%s7 + $0x30] sm:$0x3]
    %v1374 = vld [vmem:[%s8] sm:$0x1]
    %v1376 = vlaneseq
    %v1377 = vshrl.u32 %v1376, 7
    %v1378 = vsub.s32 0, %v1377
    %v1379 = vrot.slane %v1374, %v1378
    %v1382 = vsel %vm168, %v1366, 0
    %v1385 = vsel %vm67, %v1373, 0
    %1387 = vmatprep.subr.mxu0 0.0
    %1388 = vmatpush1.msra.mxu0 %v1367
    %1389 = vmatprep.subr.mxu0 0.0
    %1390 = vmatpush1.msra.mxu0 %v1368
    %1391 = vmatprep.subr.mxu0 0.0
    %1392 = vmatpush1.msra.mxu0 %v1369
    %1393 = vmatprep.subr.mxu0 0.0
    %1394 = vmatpush1.msra.mxu0 %v1370
    %1395 = vmatprep.subr.mxu0 0.0
    %1396 = vmatpush1.msra.mxu0 %v1371
    %1397 = vmatprep.subr.mxu0 0.0
    %1398 = vmatpush1.msra.mxu0 %v1372
    %1399 = vmatprep.subr.mxu0 0.0
    %1400 = vmatpush1.msra.mxu0 %v1385
    %1401 = vmatprep.subr.mxu0 0.0
    %1402 = vmatpush1.msra.mxu0 0.0
    %1403 = vmatprep.subr.mxu0 0.0
    %1404 = vmatpush1.msra.mxu0 0.0
    %1405 = vmatprep.subr.mxu0 0.0
    %1406 = vmatpush1.msra.mxu0 0.0
    %1407 = vmatprep.subr.mxu0 0.0
    %1408 = vmatpush1.msra.mxu0 0.0
    %1409 = vmatprep.subr.mxu0 0.0
    %1410 = vmatpush1.msra.mxu0 0.0
    %1411 = vmatprep.subr.mxu0 0.0
    %1412 = vmatpush1.msra.mxu0 0.0
    %1413 = vmatprep.subr.mxu0 0.0
    %1414 = vmatpush1.msra.mxu0 0.0
    %1415 = vmatprep.subr.mxu0 0.0
    %1416 = vmatpush1.msra.mxu0 0.0
    %1417 = vmatprep.subr.mxu0 0.0
    %1418 = vmatpush1.msra.mxu0 0.0
    %1419 = vmatprep.subr.mxu0 0.0
    %1420 = vmatpush1.msra.mxu0 0.0
    %1421 = vmatprep.subr.mxu0 0.0
    %1422 = vmatpush1.msra.mxu0 0.0
    %1423 = vmatprep.subr.mxu0 0.0
    %1424 = vmatpush1.msra.mxu0 0.0
    %1425 = vmatprep.subr.mxu0 0.0
    %1426 = vmatpush1.msra.mxu0 0.0
    %1427 = vmatprep.subr.mxu0 0.0
    %1428 = vmatpush1.msra.mxu0 0.0
    %1429 = vmatprep.subr.mxu0 0.0
    %1430 = vmatpush1.msra.mxu0 0.0
    %1431 = vmatprep.subr.mxu0 0.0
    %1432 = vmatpush1.msra.mxu0 0.0
    %1433 = vmatprep.subr.mxu0 0.0
    %1434 = vmatpush1.msra.mxu0 0.0
    %1435 = vmatprep.subr.mxu0 0.0
    %1436 = vmatpush1.msra.mxu0 0.0
    %1437 = vmatprep.subr.mxu0 0.0
    %1438 = vmatpush1.msra.mxu0 0.0
    %1439 = vmatprep.subr.mxu0 0.0
    %1440 = vmatpush1.msra.mxu0 0.0
    %1441 = vmatprep.subr.mxu0 0.0
    %1442 = vmatpush1.msra.mxu0 0.0
    %1443 = vmatprep.subr.mxu0 0.0
    %1444 = vmatpush1.msra.mxu0 0.0
    %1445 = vmatprep.subr.mxu0 0.0
    %1446 = vmatpush1.msra.mxu0 0.0
    %1447 = vmatprep.subr.mxu0 0.0
    %1448 = vmatpush1.msra.mxu0 0.0
    %1449 = vmatprep.subr.mxu0 0.0
    %1450 = vmatpush1.msra.mxu0 0.0
    %1451 = vmatprep.mubr.f32.mxu0 0.0
    %1452 = vmatmul.mubr.f32.gmra.mrb[0].mxu0 %v1382
    %v1453 = vpop.f32.mrb[0].mxu0
    %v1454 = vadd.f32 %v1379, %v1453
    %v1455 = vpop.f32.mrb[0].mxu0
    %1456 = vdwg.mxu0
    %vm1457 = vcmask 15360
    %1458 = vst.msk [vmem:[%s9] sm:$0xff] %vm1457, %v1454
    // Predicated region
    $region42: #{tpu_custom_call.1} parent=1 // pred_check
      _
    $region43: #{tpu_custom_call.1} parent=1 // pred_check_branch
      %1460 = sbr.rel (0) target = $region45
    $region44: #{tpu_custom_call.1} parent=1 // pred_region
      _
    $region45: #{tpu_custom_call.1} parent=1 // pred_fallthru
      _
    // Predicated region
    $region46: #{tpu_custom_call.1} parent=1 // pred_check
      _
    $region47: #{tpu_custom_call.1} parent=1 // pred_check_branch
      %1462 = sbr.rel (0) target = $region49
    $region48: #{tpu_custom_call.1} parent=1 // pred_region
      _
    $region49: #{tpu_custom_call.1} parent=1 // pred_fallthru
      _
    %1463 = vsyncpa [#allocation3], 1

</llo_original>
